<compile_context>
chip_gen: v7x
topology: tpu7x:2x2x1
jax: 0.10.0
libtpu: 0.0.40
codegen_flags: <defaults>
</compile_context>

<pallas_src>
import jax
import jax.numpy as jnp
from jax.experimental import pallas as pl
from jax.experimental.pallas import tpu as pltpu

EXPANSION = 4
BN_EPS = 1e-5


def _round_up(v, m):
    return (v + m - 1) // m * m


def _make_kernel(has_downsample, Ho, Wo, pitch, top):
    """Fused pre-activation bottleneck for one NHWC image per grid step."""
    HW = Ho * Wo
    M2 = Ho * pitch          # conv2 rows at the padded pitch

    def kernel(*refs):
        if has_downsample:
            (x_ref, s1_ref, b1_ref, w1_ref, s2_ref, b2_ref, w2_ref,
             s3_ref, b3_ref, w3_ref, wd_ref, bd_ref,
             o_ref, pad_ref) = refs
        else:
            (x_ref, s1_ref, b1_ref, w1_ref, s2_ref, b2_ref, w2_ref,
             s3_ref, b3_ref, w3_ref,
             o_ref, pad_ref) = refs
            wd_ref = bd_ref = None

        Cin = x_ref.shape[-1]
        P = w1_ref.shape[1]

        x2d = x_ref[...].reshape(HW, Cin)                          # f32

        # bn1 -> relu -> conv1 (1x1; stride already folded into the tile).
        a1 = jnp.maximum(x2d * s1_ref[...] + b1_ref[...], 0.0)
        y1 = jnp.dot(a1.astype(jnp.bfloat16), w1_ref[...],
                     preferred_element_type=jnp.float32)           # (HW, P)

        # bn2 -> relu (f32 VPU math), bf16 operands for the conv2 matmuls.
        a2 = jnp.maximum(y1 * s2_ref[...] + b2_ref[...], 0.0).astype(jnp.bfloat16)

        # Stage the conv2 input into the flat zero-padded scratch.  Re-zeroed
        # every grid step (so the batch axis can be "parallel"); image row h
        # lands at the 16-aligned flat row top + h*pitch, so every scatter
        # store destination is sublane-aligned.  Row tails [Wo, pitch) and the
        # guard blocks above/below stay zero and provide the conv padding.
        pad_ref[...] = jnp.zeros(pad_ref.shape, pad_ref.dtype)
        a2_3d = a2.reshape(Ho, Wo, P)
        for h in range(Ho):
            dst = top + h * pitch
            pad_ref[dst:dst + Wo, :] = a2_3d[h]

        # conv2: 3x3, stride 1, pad 1.  One (M2 + 2*pitch, P) strip load per
        # kw column (kw=1 aligned, kw=0/2 off-by-one), three 16-aligned value
        # sub-slices per strip, nine matmuls accumulated in a value — no VMEM
        # accumulator scratch.
        acc = None
        for kw in range(3):
            start = top - pitch + (kw - 1)
            strip = pad_ref[start:start + M2 + 2 * pitch, :]        # bf16
            for kh in range(3):
                patch = strip[kh * pitch:kh * pitch + M2, :]        # aligned
                part = jnp.dot(patch, w2_ref[kh, kw],
                               preferred_element_type=jnp.float32)  # (M2, P)
                acc = part if acc is None else acc + part

        # Compact padded-pitch rows to a dense (HW, P) block once; bn3/conv3/
        # residual then run dense and the epilogue is a single full store.
        y2 = acc.reshape(Ho, pitch, P)[:, :Wo, :].reshape(HW, P)

        # bn3 -> relu -> conv3 (1x1).
        a3 = jnp.maximum(y2 * s3_ref[...] + b3_ref[...], 0.0)
        y3 = jnp.dot(a3.astype(jnp.bfloat16), w3_ref[...],
                     preferred_element_type=jnp.float32)            # (HW, P4)

        # Identity / downsample path.  Downsample conv bias + BN are folded
        # into wd/bd in the wrapper; no matmul at all for a pure identity.
        if has_downsample:
            idn = jnp.dot(x2d.astype(jnp.bfloat16), wd_ref[...],
                          preferred_element_type=jnp.float32) + bd_ref[...]
        else:
            idn = x2d                                               # Cin == P4

        # Residual add + single lane-dense full-tile store.
        o_ref[...] = (y3 + idn).reshape(o_ref.shape).astype(o_ref.dtype)

    return kernel


def _vmem_limit_bytes():
    # Leave headroom for compiler-internal scratch and double-buffered I/O:
    # ~48 MiB on v7x (64 MiB physical), ~100 MiB on v5e/v6e (128 MiB).
    try:
        cap = int(pltpu.get_tpu_info().vmem_capacity_bytes)
    except Exception:
        cap = 64 * 1024 * 1024
    return max(32 * 1024 * 1024, min(cap - 16 * 1024 * 1024, 100 * 1024 * 1024))


def preactivation_bottleneck(x_nchw, params, *, stride):
    """NCHW in/out wrapper; the Pallas kernel runs on NHWC, grid over batch."""
    has_downsample = "wd" in params

    # conv1 / downsample are 1x1 convs with stride s == spatial subsample;
    # bn1/relu are elementwise, so subsampling first is exact for both paths.
    # Subsample in NCHW *before* the transpose (stride^2 fewer bytes moved).
    xs_nchw = x_nchw[:, :, ::stride, ::stride]
    x = jnp.transpose(xs_nchw, (0, 2, 3, 1)).astype(jnp.float32)   # NCHW->NHWC
    N, Ho, Wo, Cin = x.shape
    P = params["w1"].shape[1]
    P4 = params["w3"].shape[1]

    def row(v):
        return jnp.asarray(v, jnp.float32).reshape(1, -1)

    def bf16(w):
        return jnp.asarray(w, jnp.bfloat16)

    args = [
        x,
        row(params["s1"]), row(params["b1"]), bf16(params["w1"]),
        row(params["s2"]), row(params["b2"]), bf16(params["w2"]),
        row(params["s3"]), row(params["b3"]), bf16(params["w3"]),
    ]
    if has_downsample:
        # Fold the downsample BN into its 1x1 conv: (x@wd + bd)*sd + bdn.
        wd_f = params["wd"] * params["sd"][None, :]
        bd_f = params["bd"] * params["sd"] + params["bdn"]
        args += [bf16(wd_f), row(bd_f)]
    else:
        assert Cin == P4 and stride == 1, "identity path requires cin == p4"

    # conv2 staging geometry: 16-aligned flat row pitch (bf16 sublane packing),
    # the interior starts at the 16-aligned offset `top`, with zero guard
    # blocks above/below plus slack so every tap strip slice stays in bounds.
    pitch = _round_up(Wo + 2, 16)
    top = pitch + 16
    n_pad_rows = top + Ho * pitch + pitch + 16

    def full_spec(a):
        nd = a.ndim
        return pl.BlockSpec(a.shape, lambda n, _nd=nd: (0,) * _nd)

    in_specs = [pl.BlockSpec((1, Ho, Wo, Cin), lambda n: (n, 0, 0, 0))]
    in_specs += [full_spec(a) for a in args[1:]]

    out_nhwc = pl.pallas_call(
        _make_kernel(has_downsample, Ho, Wo, pitch, top),
        out_shape=jax.ShapeDtypeStruct((N, Ho, Wo, P4), jnp.float32),
        grid_spec=pltpu.PrefetchScalarGridSpec(
            num_scalar_prefetch=0,
            grid=(N,),
            in_specs=in_specs,
            out_specs=pl.BlockSpec((1, Ho, Wo, P4), lambda n: (n, 0, 0, 0)),
            scratch_shapes=[
                pltpu.VMEM((n_pad_rows, P), jnp.bfloat16),  # padded conv2 input
            ]),
        compiler_params=pltpu.CompilerParams(
            # Batch images are independent and the scratch is re-initialised
            # every step, so "parallel" is safe (uses both v7x TensorCores).
            dimension_semantics=("parallel",),
            vmem_limit_bytes=_vmem_limit_bytes()),
    )(*args)

    return jnp.transpose(out_nhwc, (0, 3, 1, 2))   # NHWC -> NCHW


def _bn_fold(key, c):
    kg, kb, km, kv = jax.random.split(key, 4)
    gamma = 1.0 + 0.1 * jax.random.normal(kg, (c,), jnp.float32)
    beta = 0.1 * jax.random.normal(kb, (c,), jnp.float32)
    mean = 0.1 * jax.random.normal(km, (c,), jnp.float32)
    var = 0.5 + jnp.abs(jax.random.normal(kv, (c,), jnp.float32))
    scale = gamma * jax.lax.rsqrt(var + BN_EPS)
    bias = beta - mean * scale
    return scale, bias


def make_params(key, in_planes, planes, stride):
    cin = in_planes * EXPANSION
    p = planes
    p4 = planes * EXPANSION
    ks = jax.random.split(key, 9)

    s1, b1 = _bn_fold(ks[0], cin)
    w1 = 0.1 * jax.random.normal(ks[1], (cin, p), jnp.float32)
    s2, b2 = _bn_fold(ks[2], p)
    w2 = 0.1 * jax.random.normal(ks[3], (3, 3, p, p), jnp.float32)   # HWIO
    s3, b3 = _bn_fold(ks[4], p)
    w3 = 0.1 * jax.random.normal(ks[5], (p, p4), jnp.float32)

    params = dict(s1=s1, b1=b1, w1=w1, s2=s2, b2=b2, w2=w2, s3=s3, b3=b3, w3=w3)
    if in_planes != planes or stride != 1:
        params["wd"] = 0.1 * jax.random.normal(ks[6], (cin, p4), jnp.float32)
        params["bd"] = 0.1 * jax.random.normal(ks[7], (p4,), jnp.float32)  # conv bias (bias=True)
        params["sd"], params["bdn"] = _bn_fold(ks[8], p4)
    return params


def reference_forward(x_nchw, params, *, stride):
    """Pure-JAX reference (lax.conv) matching the PyTorch module semantics."""
    x = jnp.transpose(x_nchw, (0, 2, 3, 1)).astype(jnp.float32)
    dn = ("NHWC", "HWIO", "NHWC")

    a = jax.nn.relu(x * params["s1"] + params["b1"])
    y = jax.lax.conv_general_dilated(
        a, params["w1"].reshape(1, 1, *params["w1"].shape),
        (stride, stride), "VALID", dimension_numbers=dn)
    a = jax.nn.relu(y * params["s2"] + params["b2"])
    y = jax.lax.conv_general_dilated(
        a, params["w2"], (1, 1), "SAME", dimension_numbers=dn)
    a = jax.nn.relu(y * params["s3"] + params["b3"])
    y = jax.lax.conv_general_dilated(
        a, params["w3"].reshape(1, 1, *params["w3"].shape),
        (1, 1), "VALID", dimension_numbers=dn)

    if "wd" in params:
        idn = jax.lax.conv_general_dilated(
            x, params["wd"].reshape(1, 1, *params["wd"].shape),
            (stride, stride), "VALID", dimension_numbers=dn) + params["bd"]
        idn = idn * params["sd"] + params["bdn"]
    else:
        idn = x

    return jnp.transpose(y + idn, (0, 3, 1, 2))


def _run_case(key, in_planes, planes, stride, N, H, W):
    cin = in_planes * EXPANSION
    kx, kp = jax.random.split(key)
    x = jax.random.normal(kx, (N, cin, H, W), jnp.float32)   # NCHW like PyTorch
    params = make_params(kp, in_planes, planes, stride)

    out = jax.block_until_ready(preactivation_bottleneck(x, params, stride=stride))
    ref = reference_forward(x, params, stride=stride)

    assert out.shape == (N, planes * EXPANSION, H // stride, W // stride), out.shape
    assert jnp.allclose(out, ref, atol=5e-2, rtol=5e-2), \
        float(jnp.max(jnp.abs(out - ref)))


if __name__ == "__main__":
    key = jax.random.PRNGKey(0)
    k1, k2 = jax.random.split(key)

    # Case 1: downsample branch active (stride 2).
    _run_case(k1, in_planes=4, planes=4, stride=2, N=2, H=16, W=16)
    # Case 2: pure identity residual (no downsample, stride 1).
    _run_case(k2, in_planes=4, planes=4, stride=1, N=2, H=16, W=16)

    print("KERNEL_OK")
</pallas_src>

<mosaic_0001>
module attributes {stable_mosaic.version = 11 : i64} {
  func.func @kernel(%arg0: i32, %arg1: memref<1x8x8x16xf32, #tpu.memory_space<vmem>>, %arg2: memref<1x16xf32, #tpu.memory_space<vmem>>, %arg3: memref<1x16xf32, #tpu.memory_space<vmem>>, %arg4: memref<16x4xbf16, #tpu.memory_space<vmem>>, %arg5: memref<1x4xf32, #tpu.memory_space<vmem>>, %arg6: memref<1x4xf32, #tpu.memory_space<vmem>>, %arg7: memref<3x3x4x4xbf16, #tpu.memory_space<vmem>>, %arg8: memref<1x4xf32, #tpu.memory_space<vmem>>, %arg9: memref<1x4xf32, #tpu.memory_space<vmem>>, %arg10: memref<4x16xbf16, #tpu.memory_space<vmem>>, %arg11: memref<16x16xbf16, #tpu.memory_space<vmem>>, %arg12: memref<1x16xf32, #tpu.memory_space<vmem>>, %arg13: memref<1x8x8x16xf32, #tpu.memory_space<vmem>>, %arg14: memref<192x4xbf16, #tpu.memory_space<vmem>>) attributes {dimension_semantics = [#tpu.dimension_semantics<parallel>], iteration_bounds = array<i64: 2>, scalar_prefetch = 0 : i64, scratch_operands = 1 : i64, tpu.core_type = #tpu.core_type<tc>, window_params = [{transform_indices = @transform_0, window_bounds = array<i64: 1, 8, 8, 16>}, {pipeline_mode = #tpu.pipeline_mode<synchronous>, transform_indices = @transform_1, window_bounds = array<i64: 1, 16>}, {pipeline_mode = #tpu.pipeline_mode<synchronous>, transform_indices = @transform_2, window_bounds = array<i64: 1, 16>}, {pipeline_mode = #tpu.pipeline_mode<synchronous>, transform_indices = @transform_3, window_bounds = array<i64: 16, 4>}, {pipeline_mode = #tpu.pipeline_mode<synchronous>, transform_indices = @transform_4, window_bounds = array<i64: 1, 4>}, {pipeline_mode = #tpu.pipeline_mode<synchronous>, transform_indices = @transform_5, window_bounds = array<i64: 1, 4>}, {pipeline_mode = #tpu.pipeline_mode<synchronous>, transform_indices = @transform_6, window_bounds = array<i64: 3, 3, 4, 4>}, {pipeline_mode = #tpu.pipeline_mode<synchronous>, transform_indices = @transform_7, window_bounds = array<i64: 1, 4>}, {pipeline_mode = #tpu.pipeline_mode<synchronous>, transform_indices = @transform_8, window_bounds = array<i64: 1, 4>}, {pipeline_mode = #tpu.pipeline_mode<synchronous>, transform_indices = @transform_9, window_bounds = array<i64: 4, 16>}, {pipeline_mode = #tpu.pipeline_mode<synchronous>, transform_indices = @transform_10, window_bounds = array<i64: 16, 16>}, {pipeline_mode = #tpu.pipeline_mode<synchronous>, transform_indices = @transform_11, window_bounds = array<i64: 1, 16>}, {transform_indices = @transform_12, window_bounds = array<i64: 1, 8, 8, 16>}]} {
    %c0 = arith.constant 0 : index
    %c0_0 = arith.constant 0 : index
    %c0_1 = arith.constant 0 : index
    %c0_2 = arith.constant 0 : index
    %0 = vector.load %arg1[%c0, %c0_0, %c0_1, %c0_2] : memref<1x8x8x16xf32, #tpu.memory_space<vmem>>, vector<1x8x8x16xf32>
    %1 = vector.shape_cast %0 : vector<1x8x8x16xf32> to vector<64x16xf32>
    %c0_3 = arith.constant 0 : index
    %c0_4 = arith.constant 0 : index
    %2 = vector.load %arg2[%c0_3, %c0_4] : memref<1x16xf32, #tpu.memory_space<vmem>>, vector<1x16xf32>
    %3 = vector.broadcast %2 : vector<1x16xf32> to vector<64x16xf32>
    %4 = arith.mulf %1, %3 : vector<64x16xf32>
    %c0_5 = arith.constant 0 : index
    %c0_6 = arith.constant 0 : index
    %5 = vector.load %arg3[%c0_5, %c0_6] : memref<1x16xf32, #tpu.memory_space<vmem>>, vector<1x16xf32>
    %6 = vector.broadcast %5 : vector<1x16xf32> to vector<64x16xf32>
    %7 = arith.addf %4, %6 : vector<64x16xf32>
    %cst = arith.constant 0.000000e+00 : f32
    %8 = vector.broadcast %cst : f32 to vector<64x16xf32>
    %9 = arith.maximumf %7, %8 : vector<64x16xf32>
    %10 = arith.truncf %9 : vector<64x16xf32> to vector<64x16xbf16>
    %c0_7 = arith.constant 0 : index
    %c0_8 = arith.constant 0 : index
    %11 = vector.load %arg4[%c0_7, %c0_8] : memref<16x4xbf16, #tpu.memory_space<vmem>>, vector<16x4xbf16>
    %cst_9 = arith.constant dense<0.000000e+00> : vector<64x4xf32>
    %12 = tpu.matmul %10, %11, %cst_9 {dimension_numbers = #tpu.dot_dimension_numbers<[1], [0], [0], [1], [0, 0, 1, 1], [], []>} : vector<64x16xbf16>, vector<16x4xbf16>, vector<64x4xf32> -> vector<64x4xf32>
    %c0_10 = arith.constant 0 : index
    %c0_11 = arith.constant 0 : index
    %13 = vector.load %arg5[%c0_10, %c0_11] : memref<1x4xf32, #tpu.memory_space<vmem>>, vector<1x4xf32>
    %14 = vector.broadcast %13 : vector<1x4xf32> to vector<64x4xf32>
    %15 = arith.mulf %12, %14 : vector<64x4xf32>
    %c0_12 = arith.constant 0 : index
    %c0_13 = arith.constant 0 : index
    %16 = vector.load %arg6[%c0_12, %c0_13] : memref<1x4xf32, #tpu.memory_space<vmem>>, vector<1x4xf32>
    %17 = vector.broadcast %16 : vector<1x4xf32> to vector<64x4xf32>
    %18 = arith.addf %15, %17 : vector<64x4xf32>
    %cst_14 = arith.constant 0.000000e+00 : f32
    %19 = vector.broadcast %cst_14 : f32 to vector<64x4xf32>
    %20 = arith.maximumf %18, %19 : vector<64x4xf32>
    %21 = arith.truncf %20 : vector<64x4xf32> to vector<64x4xbf16>
    %cst_15 = arith.constant 0.000000e+00 : bf16
    %22 = vector.broadcast %cst_15 : bf16 to vector<192x4xbf16>
    %c0_16 = arith.constant 0 : index
    %c0_17 = arith.constant 0 : index
    %23 = vector.load %arg14[%c0_16, %c0_17] : memref<192x4xbf16, #tpu.memory_space<vmem>>, vector<192x4xbf16>
    tpu.vector_store %arg14[%c0_16, %c0_17], %22 {strides = array<i32>} : memref<192x4xbf16, #tpu.memory_space<vmem>>, vector<192x4xbf16>,
    %24 = vector.shape_cast %21 : vector<64x4xbf16> to vector<8x8x4xbf16>
    %25 = vector.extract_strided_slice %24 {offsets = [0, 0, 0], sizes = [1, 8, 4], strides = [1, 1, 1]} : vector<8x8x4xbf16> to vector<1x8x4xbf16>
    %26 = vector.shape_cast %25 : vector<1x8x4xbf16> to vector<8x4xbf16>
    %c32 = arith.constant 32 : index
    %c0_18 = arith.constant 0 : index
    %27 = vector.load %arg14[%c32, %c0_18] : memref<192x4xbf16, #tpu.memory_space<vmem>>, vector<8x4xbf16>
    tpu.vector_store %arg14[%c32, %c0_18], %26 {strides = array<i32>} : memref<192x4xbf16, #tpu.memory_space<vmem>>, vector<8x4xbf16>,
    %28 = vector.extract_strided_slice %24 {offsets = [1, 0, 0], sizes = [1, 8, 4], strides = [1, 1, 1]} : vector<8x8x4xbf16> to vector<1x8x4xbf16>
    %29 = vector.shape_cast %28 : vector<1x8x4xbf16> to vector<8x4xbf16>
    %c48 = arith.constant 48 : index
    %c0_19 = arith.constant 0 : index
    %30 = vector.load %arg14[%c48, %c0_19] : memref<192x4xbf16, #tpu.memory_space<vmem>>, vector<8x4xbf16>
    tpu.vector_store %arg14[%c48, %c0_19], %29 {strides = array<i32>} : memref<192x4xbf16, #tpu.memory_space<vmem>>, vector<8x4xbf16>,
    %31 = vector.extract_strided_slice %24 {offsets = [2, 0, 0], sizes = [1, 8, 4], strides = [1, 1, 1]} : vector<8x8x4xbf16> to vector<1x8x4xbf16>
    %32 = vector.shape_cast %31 : vector<1x8x4xbf16> to vector<8x4xbf16>
    %c64 = arith.constant 64 : index
    %c0_20 = arith.constant 0 : index
    %33 = vector.load %arg14[%c64, %c0_20] : memref<192x4xbf16, #tpu.memory_space<vmem>>, vector<8x4xbf16>
    tpu.vector_store %arg14[%c64, %c0_20], %32 {strides = array<i32>} : memref<192x4xbf16, #tpu.memory_space<vmem>>, vector<8x4xbf16>,
    %34 = vector.extract_strided_slice %24 {offsets = [3, 0, 0], sizes = [1, 8, 4], strides = [1, 1, 1]} : vector<8x8x4xbf16> to vector<1x8x4xbf16>
    %35 = vector.shape_cast %34 : vector<1x8x4xbf16> to vector<8x4xbf16>
    %c80 = arith.constant 80 : index
    %c0_21 = arith.constant 0 : index
    %36 = vector.load %arg14[%c80, %c0_21] : memref<192x4xbf16, #tpu.memory_space<vmem>>, vector<8x4xbf16>
    tpu.vector_store %arg14[%c80, %c0_21], %35 {strides = array<i32>} : memref<192x4xbf16, #tpu.memory_space<vmem>>, vector<8x4xbf16>,
    %37 = vector.extract_strided_slice %24 {offsets = [4, 0, 0], sizes = [1, 8, 4], strides = [1, 1, 1]} : vector<8x8x4xbf16> to vector<1x8x4xbf16>
    %38 = vector.shape_cast %37 : vector<1x8x4xbf16> to vector<8x4xbf16>
    %c96 = arith.constant 96 : index
    %c0_22 = arith.constant 0 : index
    %39 = vector.load %arg14[%c96, %c0_22] : memref<192x4xbf16, #tpu.memory_space<vmem>>, vector<8x4xbf16>
    tpu.vector_store %arg14[%c96, %c0_22], %38 {strides = array<i32>} : memref<192x4xbf16, #tpu.memory_space<vmem>>, vector<8x4xbf16>,
    %40 = vector.extract_strided_slice %24 {offsets = [5, 0, 0], sizes = [1, 8, 4], strides = [1, 1, 1]} : vector<8x8x4xbf16> to vector<1x8x4xbf16>
    %41 = vector.shape_cast %40 : vector<1x8x4xbf16> to vector<8x4xbf16>
    %c112 = arith.constant 112 : index
    %c0_23 = arith.constant 0 : index
    %42 = vector.load %arg14[%c112, %c0_23] : memref<192x4xbf16, #tpu.memory_space<vmem>>, vector<8x4xbf16>
    tpu.vector_store %arg14[%c112, %c0_23], %41 {strides = array<i32>} : memref<192x4xbf16, #tpu.memory_space<vmem>>, vector<8x4xbf16>,
    %43 = vector.extract_strided_slice %24 {offsets = [6, 0, 0], sizes = [1, 8, 4], strides = [1, 1, 1]} : vector<8x8x4xbf16> to vector<1x8x4xbf16>
    %44 = vector.shape_cast %43 : vector<1x8x4xbf16> to vector<8x4xbf16>
    %c128 = arith.constant 128 : index
    %c0_24 = arith.constant 0 : index
    %45 = vector.load %arg14[%c128, %c0_24] : memref<192x4xbf16, #tpu.memory_space<vmem>>, vector<8x4xbf16>
    tpu.vector_store %arg14[%c128, %c0_24], %44 {strides = array<i32>} : memref<192x4xbf16, #tpu.memory_space<vmem>>, vector<8x4xbf16>,
    %46 = vector.extract_strided_slice %24 {offsets = [7, 0, 0], sizes = [1, 8, 4], strides = [1, 1, 1]} : vector<8x8x4xbf16> to vector<1x8x4xbf16>
    %47 = vector.shape_cast %46 : vector<1x8x4xbf16> to vector<8x4xbf16>
    %c144 = arith.constant 144 : index
    %c0_25 = arith.constant 0 : index
    %48 = vector.load %arg14[%c144, %c0_25] : memref<192x4xbf16, #tpu.memory_space<vmem>>, vector<8x4xbf16>
    tpu.vector_store %arg14[%c144, %c0_25], %47 {strides = array<i32>} : memref<192x4xbf16, #tpu.memory_space<vmem>>, vector<8x4xbf16>,
    %c15 = arith.constant 15 : index
    %c0_26 = arith.constant 0 : index
    %49 = vector.load %arg14[%c15, %c0_26] : memref<192x4xbf16, #tpu.memory_space<vmem>>, vector<160x4xbf16>
    %50 = vector.extract_strided_slice %49 {offsets = [0, 0], sizes = [128, 4], strides = [1, 1]} : vector<160x4xbf16> to vector<128x4xbf16>
    %c0_27 = arith.constant 0 : index
    %c0_28 = arith.constant 0 : index
    %c0_29 = arith.constant 0 : index
    %c0_30 = arith.constant 0 : index
    %51 = vector.load %arg7[%c0_27, %c0_28, %c0_29, %c0_30] : memref<3x3x4x4xbf16, #tpu.memory_space<vmem>>, vector<1x1x4x4xbf16>
    %52 = vector.shape_cast %51 : vector<1x1x4x4xbf16> to vector<4x4xbf16>
    %cst_31 = arith.constant dense<0.000000e+00> : vector<128x4xf32>
    %53 = tpu.matmul %50, %52, %cst_31 {dimension_numbers = #tpu.dot_dimension_numbers<[1], [0], [0], [1], [0, 0, 1, 1], [], []>} : vector<128x4xbf16>, vector<4x4xbf16>, vector<128x4xf32> -> vector<128x4xf32>
    %54 = vector.extract_strided_slice %49 {offsets = [16, 0], sizes = [128, 4], strides = [1, 1]} : vector<160x4xbf16> to vector<128x4xbf16>
    %c1 = arith.constant 1 : index
    %c0_32 = arith.constant 0 : index
    %c0_33 = arith.constant 0 : index
    %c0_34 = arith.constant 0 : index
    %55 = vector.load %arg7[%c1, %c0_32, %c0_33, %c0_34] : memref<3x3x4x4xbf16, #tpu.memory_space<vmem>>, vector<1x1x4x4xbf16>
    %56 = vector.shape_cast %55 : vector<1x1x4x4xbf16> to vector<4x4xbf16>
    %cst_35 = arith.constant dense<0.000000e+00> : vector<128x4xf32>
    %57 = tpu.matmul %54, %56, %cst_35 {dimension_numbers = #tpu.dot_dimension_numbers<[1], [0], [0], [1], [0, 0, 1, 1], [], []>} : vector<128x4xbf16>, vector<4x4xbf16>, vector<128x4xf32> -> vector<128x4xf32>
    %58 = arith.addf %53, %57 : vector<128x4xf32>
    %59 = vector.extract_strided_slice %49 {offsets = [32, 0], sizes = [128, 4], strides = [1, 1]} : vector<160x4xbf16> to vector<128x4xbf16>
    %c2 = arith.constant 2 : index
    %c0_36 = arith.constant 0 : index
    %c0_37 = arith.constant 0 : index
    %c0_38 = arith.constant 0 : index
    %60 = vector.load %arg7[%c2, %c0_36, %c0_37, %c0_38] : memref<3x3x4x4xbf16, #tpu.memory_space<vmem>>, vector<1x1x4x4xbf16>
    %61 = vector.shape_cast %60 : vector<1x1x4x4xbf16> to vector<4x4xbf16>
    %cst_39 = arith.constant dense<0.000000e+00> : vector<128x4xf32>
    %62 = tpu.matmul %59, %61, %cst_39 {dimension_numbers = #tpu.dot_dimension_numbers<[1], [0], [0], [1], [0, 0, 1, 1], [], []>} : vector<128x4xbf16>, vector<4x4xbf16>, vector<128x4xf32> -> vector<128x4xf32>
    %63 = arith.addf %58, %62 : vector<128x4xf32>
    %c16 = arith.constant 16 : index
    %c0_40 = arith.constant 0 : index
    %64 = vector.load %arg14[%c16, %c0_40] : memref<192x4xbf16, #tpu.memory_space<vmem>>, vector<160x4xbf16>
    %65 = vector.extract_strided_slice %64 {offsets = [0, 0], sizes = [128, 4], strides = [1, 1]} : vector<160x4xbf16> to vector<128x4xbf16>
    %c0_41 = arith.constant 0 : index
    %c1_42 = arith.constant 1 : index
    %c0_43 = arith.constant 0 : index
    %c0_44 = arith.constant 0 : index
    %66 = vector.load %arg7[%c0_41, %c1_42, %c0_43, %c0_44] : memref<3x3x4x4xbf16, #tpu.memory_space<vmem>>, vector<1x1x4x4xbf16>
    %67 = vector.shape_cast %66 : vector<1x1x4x4xbf16> to vector<4x4xbf16>
    %cst_45 = arith.constant dense<0.000000e+00> : vector<128x4xf32>
    %68 = tpu.matmul %65, %67, %cst_45 {dimension_numbers = #tpu.dot_dimension_numbers<[1], [0], [0], [1], [0, 0, 1, 1], [], []>} : vector<128x4xbf16>, vector<4x4xbf16>, vector<128x4xf32> -> vector<128x4xf32>
    %69 = arith.addf %63, %68 : vector<128x4xf32>
    %70 = vector.extract_strided_slice %64 {offsets = [16, 0], sizes = [128, 4], strides = [1, 1]} : vector<160x4xbf16> to vector<128x4xbf16>
    %c1_46 = arith.constant 1 : index
    %c1_47 = arith.constant 1 : index
    %c0_48 = arith.constant 0 : index
    %c0_49 = arith.constant 0 : index
    %71 = vector.load %arg7[%c1_46, %c1_47, %c0_48, %c0_49] : memref<3x3x4x4xbf16, #tpu.memory_space<vmem>>, vector<1x1x4x4xbf16>
    %72 = vector.shape_cast %71 : vector<1x1x4x4xbf16> to vector<4x4xbf16>
    %cst_50 = arith.constant dense<0.000000e+00> : vector<128x4xf32>
    %73 = tpu.matmul %70, %72, %cst_50 {dimension_numbers = #tpu.dot_dimension_numbers<[1], [0], [0], [1], [0, 0, 1, 1], [], []>} : vector<128x4xbf16>, vector<4x4xbf16>, vector<128x4xf32> -> vector<128x4xf32>
    %74 = arith.addf %69, %73 : vector<128x4xf32>
    %75 = vector.extract_strided_slice %64 {offsets = [32, 0], sizes = [128, 4], strides = [1, 1]} : vector<160x4xbf16> to vector<128x4xbf16>
    %c2_51 = arith.constant 2 : index
    %c1_52 = arith.constant 1 : index
    %c0_53 = arith.constant 0 : index
    %c0_54 = arith.constant 0 : index
    %76 = vector.load %arg7[%c2_51, %c1_52, %c0_53, %c0_54] : memref<3x3x4x4xbf16, #tpu.memory_space<vmem>>, vector<1x1x4x4xbf16>
    %77 = vector.shape_cast %76 : vector<1x1x4x4xbf16> to vector<4x4xbf16>
    %cst_55 = arith.constant dense<0.000000e+00> : vector<128x4xf32>
    %78 = tpu.matmul %75, %77, %cst_55 {dimension_numbers = #tpu.dot_dimension_numbers<[1], [0], [0], [1], [0, 0, 1, 1], [], []>} : vector<128x4xbf16>, vector<4x4xbf16>, vector<128x4xf32> -> vector<128x4xf32>
    %79 = arith.addf %74, %78 : vector<128x4xf32>
    %c17 = arith.constant 17 : index
    %c0_56 = arith.constant 0 : index
    %80 = vector.load %arg14[%c17, %c0_56] : memref<192x4xbf16, #tpu.memory_space<vmem>>, vector<160x4xbf16>
    %81 = vector.extract_strided_slice %80 {offsets = [0, 0], sizes = [128, 4], strides = [1, 1]} : vector<160x4xbf16> to vector<128x4xbf16>
    %c0_57 = arith.constant 0 : index
    %c2_58 = arith.constant 2 : index
    %c0_59 = arith.constant 0 : index
    %c0_60 = arith.constant 0 : index
    %82 = vector.load %arg7[%c0_57, %c2_58, %c0_59, %c0_60] : memref<3x3x4x4xbf16, #tpu.memory_space<vmem>>, vector<1x1x4x4xbf16>
    %83 = vector.shape_cast %82 : vector<1x1x4x4xbf16> to vector<4x4xbf16>
    %cst_61 = arith.constant dense<0.000000e+00> : vector<128x4xf32>
    %84 = tpu.matmul %81, %83, %cst_61 {dimension_numbers = #tpu.dot_dimension_numbers<[1], [0], [0], [1], [0, 0, 1, 1], [], []>} : vector<128x4xbf16>, vector<4x4xbf16>, vector<128x4xf32> -> vector<128x4xf32>
    %85 = arith.addf %79, %84 : vector<128x4xf32>
    %86 = vector.extract_strided_slice %80 {offsets = [16, 0], sizes = [128, 4], strides = [1, 1]} : vector<160x4xbf16> to vector<128x4xbf16>
    %c1_62 = arith.constant 1 : index
    %c2_63 = arith.constant 2 : index
    %c0_64 = arith.constant 0 : index
    %c0_65 = arith.constant 0 : index
    %87 = vector.load %arg7[%c1_62, %c2_63, %c0_64, %c0_65] : memref<3x3x4x4xbf16, #tpu.memory_space<vmem>>, vector<1x1x4x4xbf16>
    %88 = vector.shape_cast %87 : vector<1x1x4x4xbf16> to vector<4x4xbf16>
    %cst_66 = arith.constant dense<0.000000e+00> : vector<128x4xf32>
    %89 = tpu.matmul %86, %88, %cst_66 {dimension_numbers = #tpu.dot_dimension_numbers<[1], [0], [0], [1], [0, 0, 1, 1], [], []>} : vector<128x4xbf16>, vector<4x4xbf16>, vector<128x4xf32> -> vector<128x4xf32>
    %90 = arith.addf %85, %89 : vector<128x4xf32>
    %91 = vector.extract_strided_slice %80 {offsets = [32, 0], sizes = [128, 4], strides = [1, 1]} : vector<160x4xbf16> to vector<128x4xbf16>
    %c2_67 = arith.constant 2 : index
    %c2_68 = arith.constant 2 : index
    %c0_69 = arith.constant 0 : index
    %c0_70 = arith.constant 0 : index
    %92 = vector.load %arg7[%c2_67, %c2_68, %c0_69, %c0_70] : memref<3x3x4x4xbf16, #tpu.memory_space<vmem>>, vector<1x1x4x4xbf16>
    %93 = vector.shape_cast %92 : vector<1x1x4x4xbf16> to vector<4x4xbf16>
    %cst_71 = arith.constant dense<0.000000e+00> : vector<128x4xf32>
    %94 = tpu.matmul %91, %93, %cst_71 {dimension_numbers = #tpu.dot_dimension_numbers<[1], [0], [0], [1], [0, 0, 1, 1], [], []>} : vector<128x4xbf16>, vector<4x4xbf16>, vector<128x4xf32> -> vector<128x4xf32>
    %95 = arith.addf %90, %94 : vector<128x4xf32>
    %96 = vector.shape_cast %95 : vector<128x4xf32> to vector<8x16x4xf32>
    %97 = vector.extract_strided_slice %96 {offsets = [0, 0, 0], sizes = [8, 8, 4], strides = [1, 1, 1]} : vector<8x16x4xf32> to vector<8x8x4xf32>
    %98 = vector.shape_cast %97 : vector<8x8x4xf32> to vector<64x4xf32>
    %c0_72 = arith.constant 0 : index
    %c0_73 = arith.constant 0 : index
    %99 = vector.load %arg8[%c0_72, %c0_73] : memref<1x4xf32, #tpu.memory_space<vmem>>, vector<1x4xf32>
    %100 = vector.broadcast %99 : vector<1x4xf32> to vector<64x4xf32>
    %101 = arith.mulf %98, %100 : vector<64x4xf32>
    %c0_74 = arith.constant 0 : index
    %c0_75 = arith.constant 0 : index
    %102 = vector.load %arg9[%c0_74, %c0_75] : memref<1x4xf32, #tpu.memory_space<vmem>>, vector<1x4xf32>
    %103 = vector.broadcast %102 : vector<1x4xf32> to vector<64x4xf32>
    %104 = arith.addf %101, %103 : vector<64x4xf32>
    %cst_76 = arith.constant 0.000000e+00 : f32
    %105 = vector.broadcast %cst_76 : f32 to vector<64x4xf32>
    %106 = arith.maximumf %104, %105 : vector<64x4xf32>
    %107 = arith.truncf %106 : vector<64x4xf32> to vector<64x4xbf16>
    %c0_77 = arith.constant 0 : index
    %c0_78 = arith.constant 0 : index
    %108 = vector.load %arg10[%c0_77, %c0_78] : memref<4x16xbf16, #tpu.memory_space<vmem>>, vector<4x16xbf16>
    %cst_79 = arith.constant dense<0.000000e+00> : vector<64x16xf32>
    %109 = tpu.matmul %107, %108, %cst_79 {dimension_numbers = #tpu.dot_dimension_numbers<[1], [0], [0], [1], [0, 0, 1, 1], [], []>} : vector<64x4xbf16>, vector<4x16xbf16>, vector<64x16xf32> -> vector<64x16xf32>
    %110 = arith.truncf %1 : vector<64x16xf32> to vector<64x16xbf16>
    %c0_80 = arith.constant 0 : index
    %c0_81 = arith.constant 0 : index
    %111 = vector.load %arg11[%c0_80, %c0_81] : memref<16x16xbf16, #tpu.memory_space<vmem>>, vector<16x16xbf16>
    %cst_82 = arith.constant dense<0.000000e+00> : vector<64x16xf32>
    %112 = tpu.matmul %110, %111, %cst_82 {dimension_numbers = #tpu.dot_dimension_numbers<[1], [0], [0], [1], [0, 0, 1, 1], [], []>} : vector<64x16xbf16>, vector<16x16xbf16>, vector<64x16xf32> -> vector<64x16xf32>
    %c0_83 = arith.constant 0 : index
    %c0_84 = arith.constant 0 : index
    %113 = vector.load %arg12[%c0_83, %c0_84] : memref<1x16xf32, #tpu.memory_space<vmem>>, vector<1x16xf32>
    %114 = vector.broadcast %113 : vector<1x16xf32> to vector<64x16xf32>
    %115 = arith.addf %112, %114 : vector<64x16xf32>
    %116 = arith.addf %109, %115 : vector<64x16xf32>
    %117 = vector.shape_cast %116 : vector<64x16xf32> to vector<1x8x8x16xf32>
    %c0_85 = arith.constant 0 : index
    %c0_86 = arith.constant 0 : index
    %c0_87 = arith.constant 0 : index
    %c0_88 = arith.constant 0 : index
    %118 = vector.load %arg13[%c0_85, %c0_86, %c0_87, %c0_88] : memref<1x8x8x16xf32, #tpu.memory_space<vmem>>, vector<1x8x8x16xf32>
    tpu.vector_store %arg13[%c0_85, %c0_86, %c0_87, %c0_88], %117 {strides = array<i32>} : memref<1x8x8x16xf32, #tpu.memory_space<vmem>>, vector<1x8x8x16xf32>,
    return
  }
  func.func @transform_0(%arg0: i32) -> (i32, i32, i32, i32) {
    %c0_i32 = arith.constant 0 : i32
    %c0_i32_0 = arith.constant 0 : i32
    %c0_i32_1 = arith.constant 0 : i32
    %c0_i32_2 = arith.constant 0 : i32
    return %arg0, %c0_i32, %c0_i32_0, %c0_i32_1 : i32, i32, i32, i32
  }
  func.func @transform_1(%arg0: i32) -> (i32, i32) {
    %c0_i32 = arith.constant 0 : i32
    %c0_i32_0 = arith.constant 0 : i32
    %c0_i32_1 = arith.constant 0 : i32
    return %c0_i32, %c0_i32_0 : i32, i32
  }
  func.func @transform_2(%arg0: i32) -> (i32, i32) {
    %c0_i32 = arith.constant 0 : i32
    %c0_i32_0 = arith.constant 0 : i32
    %c0_i32_1 = arith.constant 0 : i32
    return %c0_i32, %c0_i32_0 : i32, i32
  }
  func.func @transform_3(%arg0: i32) -> (i32, i32) {
    %c0_i32 = arith.constant 0 : i32
    %c0_i32_0 = arith.constant 0 : i32
    %c0_i32_1 = arith.constant 0 : i32
    return %c0_i32, %c0_i32_0 : i32, i32
  }
  func.func @transform_4(%arg0: i32) -> (i32, i32) {
    %c0_i32 = arith.constant 0 : i32
    %c0_i32_0 = arith.constant 0 : i32
    %c0_i32_1 = arith.constant 0 : i32
    return %c0_i32, %c0_i32_0 : i32, i32
  }
  func.func @transform_5(%arg0: i32) -> (i32, i32) {
    %c0_i32 = arith.constant 0 : i32
    %c0_i32_0 = arith.constant 0 : i32
    %c0_i32_1 = arith.constant 0 : i32
    return %c0_i32, %c0_i32_0 : i32, i32
  }
  func.func @transform_6(%arg0: i32) -> (i32, i32, i32, i32) {
    %c0_i32 = arith.constant 0 : i32
    %c0_i32_0 = arith.constant 0 : i32
    %c0_i32_1 = arith.constant 0 : i32
    %c0_i32_2 = arith.constant 0 : i32
    %c0_i32_3 = arith.constant 0 : i32
    return %c0_i32, %c0_i32_0, %c0_i32_1, %c0_i32_2 : i32, i32, i32, i32
  }
  func.func @transform_7(%arg0: i32) -> (i32, i32) {
    %c0_i32 = arith.constant 0 : i32
    %c0_i32_0 = arith.constant 0 : i32
    %c0_i32_1 = arith.constant 0 : i32
    return %c0_i32, %c0_i32_0 : i32, i32
  }
  func.func @transform_8(%arg0: i32) -> (i32, i32) {
    %c0_i32 = arith.constant 0 : i32
    %c0_i32_0 = arith.constant 0 : i32
    %c0_i32_1 = arith.constant 0 : i32
    return %c0_i32, %c0_i32_0 : i32, i32
  }
  func.func @transform_9(%arg0: i32) -> (i32, i32) {
    %c0_i32 = arith.constant 0 : i32
    %c0_i32_0 = arith.constant 0 : i32
    %c0_i32_1 = arith.constant 0 : i32
    return %c0_i32, %c0_i32_0 : i32, i32
  }
  func.func @transform_10(%arg0: i32) -> (i32, i32) {
    %c0_i32 = arith.constant 0 : i32
    %c0_i32_0 = arith.constant 0 : i32
    %c0_i32_1 = arith.constant 0 : i32
    return %c0_i32, %c0_i32_0 : i32, i32
  }
  func.func @transform_11(%arg0: i32) -> (i32, i32) {
    %c0_i32 = arith.constant 0 : i32
    %c0_i32_0 = arith.constant 0 : i32
    %c0_i32_1 = arith.constant 0 : i32
    return %c0_i32, %c0_i32_0 : i32, i32
  }
  func.func @transform_12(%arg0: i32) -> (i32, i32, i32, i32) {
    %c0_i32 = arith.constant 0 : i32
    %c0_i32_0 = arith.constant 0 : i32
    %c0_i32_1 = arith.constant 0 : i32
    %c0_i32_2 = arith.constant 0 : i32
    return %arg0, %c0_i32, %c0_i32_0, %c0_i32_1 : i32, i32, i32, i32
  }
}

</mosaic_0001>

<llo_original>
// kernel: tpu_custom_call.1
$region0: #{tpu_custom_call.1}
  #allocation0 [shape = 'u32[]', space=smem, size = 0x4, offset = 0x4, fixed_abs, tag = 'smem constant byte address 0x4 - core index']
  #allocation1 [shape = 'u32[144,128]{1,0:T(1,128)}', space=vmem, size = 0x12000, scoped, tag = 'internal scratch']
  #allocation2 [shape = 'bf16[192,4]{1,0:T(16,128)(2,1)}', space=vmem, size = 0xc000, scoped, tag = 'scratch operand']
  %s0 = inlined_call_operand.hbm [shape: f32[2,8,8,16], index: 0, kind: input, shape index: {}]
  %s1 = inlined_call_operand.vmem [shape: f32[1,16], index: 1, kind: input, shape index: {}]
  %s2 = inlined_call_operand.vmem [shape: f32[1,16], index: 2, kind: input, shape index: {}]
  %s3 = inlined_call_operand.vmem [shape: bf16[16,4], index: 3, kind: input, shape index: {}]
  %s4 = inlined_call_operand.hbm [shape: f32[1,4], index: 4, kind: input, shape index: {}]
  %s5 = inlined_call_operand.hbm [shape: f32[1,4], index: 5, kind: input, shape index: {}]
  %s6 = inlined_call_operand.vmem [shape: bf16[3,3,4,4], index: 6, kind: input, shape index: {}]
  %s7 = inlined_call_operand.vmem [shape: f32[1,4], index: 7, kind: input, shape index: {}]
  %s8 = inlined_call_operand.vmem [shape: f32[1,4], index: 8, kind: input, shape index: {}]
  %s9 = inlined_call_operand.vmem [shape: bf16[4,16], index: 9, kind: input, shape index: {}]
  %s10 = inlined_call_operand.vmem [shape: bf16[16,16], index: 10, kind: input, shape index: {}]
  %s11 = inlined_call_operand.vmem [shape: f32[1,16], index: 11, kind: input, shape index: {}]
  %s12 = inlined_call_operand.hbm [shape: f32[2,8,8,16], index: 12, kind: output, shape index: {}]
  %s13 = sld [smem:[#allocation0]]
  $region93: #{tpu_custom_call.1} parent=0
    _
  %s15 = ssub.s32 1, %s13
  %s16 = scalar_select 0, %s15, %s13
  $region1: #{tpu_custom_call.1} parent=0
    #allocation3 [shape = 'u8[65536]{0}', space=vmem, size = 0x10000, scoped, tag = 'input window, operand 0']
    #allocation4 [shape = 's32[2]{0}', space=sflag, size = 0x8, scoped, tag = 'scoped memory for tpu_custom_call.1']
    #allocation5 [shape = 's32[2]{0}', space=sflag, size = 0x8, scoped, tag = 'scoped memory for tpu_custom_call.1']
    #allocation6 [shape = 'u8[512]{0}', space=vmem, size = 0x400, scoped, tag = 'input window, operand 4, single buffered']
    #allocation7 [shape = 's32[1]{0}', space=sflag, size = 0x4, scoped, tag = 'scoped memory for tpu_custom_call.1']
    #allocation8 [shape = 'u8[512]{0}', space=vmem, size = 0x400, scoped, tag = 'input window, operand 5, single buffered']
    #allocation9 [shape = 'u8[65536]{0}', space=vmem, size = 0x10000, scoped, tag = 'output window, operand 0']
    %17 = vsyncpa [#allocation4], 0
    %s18 = scalar_lea.sflag [#allocation4], 1
    %19 = vsyncpa %s18, 0
    %20 = vsyncpa [#allocation7], 0
    %21 = vsyncpa [#allocation5], 0
    %s22 = scalar_lea.sflag [#allocation5], 1
    %23 = vsyncpa %s22, 0
    loop: start=0, step=1, limit=4
    $region2: #{tpu_custom_call.1} parent=1 // loop_pre_header
      _
    $region3: #{tpu_custom_call.1} parent=1 // loop_header
      %s25 = sphi 0, %s29
      %p26 = scmp.ge.s32.totalorder %s25, 4
      %s35 = sphi 0, %s37
      %s38 = sphi 0, %s35
      %s39 = sphi 0, %s38
      %s55 = sphi 0, %s39
      %s59 = sphi 0, %s59
      %s61 = sphi 0, %s59
      %s62 = sphi 0, %s61
      %s76 = sphi 0, %s62
      %s80 = sphi 0, %s80
      %s82 = sphi 0, %s80
      %s83 = sphi 0, %s82
      %s97 = sphi 0, %s83
      %s101 = sphi 0, %s101
      %s103 = sphi 0, %s101
      %s104 = sphi 0, %s103
      %s118 = sphi 0, %s104
      %s122 = sphi 0, %s122
      %s124 = sphi 0, %s122
      %s125 = sphi 0, %s124
      %s139 = sphi 0, %s125
      %s143 = sphi 0, %s143
      %s145 = sphi 0, %s143
      %s146 = sphi 0, %s145
      %s160 = sphi 0, %s146
      %s164 = sphi 0, %s164
      %s166 = sphi 0, %s164
      %s167 = sphi 0, %s166
      %s181 = sphi 0, %s167
      %s185 = sphi 0, %s185
      %s187 = sphi 0, %s185
      %s188 = sphi 0, %s187
      %s202 = sphi 0, %s188
      %s206 = sphi 0, %s206
      %s208 = sphi 0, %s206
      %s209 = sphi 0, %s208
      %s223 = sphi 0, %s209
      %s227 = sphi 0, %s227
      %s229 = sphi 0, %s227
      %s230 = sphi 0, %s229
      %s244 = sphi 0, %s230
      %s248 = sphi 0, %s248
      %s250 = sphi 0, %s248
      %s251 = sphi 0, %s250
      %s265 = sphi 0, %s251
      %s269 = sphi 0, %s269
      %s271 = sphi 0, %s269
      %s272 = sphi 0, %s271
      %s286 = sphi 0, %s272
      %s292 = sphi 0, %s294
      %s295 = sphi 0, %s292
      %s296 = sphi 0, %s295
      %s312 = sphi 0, %s296
    $region4: #{tpu_custom_call.1} parent=1 // loop_header_branch
      %28 = sbr.rel (%p26) target = $region8
    $region5: #{tpu_custom_call.1} parent=1 // loop_body
      %s30 = ssub.s32 %s25, 1
      %s31 = ssub.s32 %s25, 2
      %s32 = sadd.s32 %s25, 1
      %s33 = ssub.s32 %s25, %s32
      %p34 = scmp.eq.s32.totalorder %s33, 0
      %s36 = sadd.s32 %s35, 1
      %s37 = scalar_select %p34, %s35, %s36
      %p40 = pneg %p34
      %p41 = scmp.eq.s32.totalorder %s25, 1
      %p42 = por %p40, %p41
      %p43 = scmp.ne.s32.totalorder %s35, %s38
      %p44 = scmp.eq.s32.totalorder %s25, 0
      %p45 = por %p43, %p44
      %p46 = scmp.ne.s32.totalorder %s35, %s38
      %p47 = scmp.eq.s32.totalorder %s30, 1
      %p48 = por %p46, %p47
      %p49 = scmp.ne.s32.totalorder %s38, %s39
      %p50 = scmp.eq.s32.totalorder %s30, 0
      %p51 = por %p49, %p50
      %p52 = scmp.ne.s32.totalorder %s38, %s39
      %p53 = scmp.eq.s32.totalorder %s31, 1
      %p54 = por %p52, %p53
      %p56 = scmp.ne.s32.totalorder %s39, %s55
      %p57 = scmp.eq.s32.totalorder %s31, 0
      %p58 = por %p56, %p57
      %s60 = sadd.s32 %s59, 1
      %p63 = scmp.eq.s32.totalorder %s25, 1
      %p64 = scmp.ne.s32.totalorder %s59, %s61
      %p65 = scmp.eq.s32.totalorder %s25, 0
      %p66 = por %p64, %p65
      %p67 = scmp.ne.s32.totalorder %s59, %s61
      %p68 = scmp.eq.s32.totalorder %s30, 1
      %p69 = por %p67, %p68
      %p70 = scmp.ne.s32.totalorder %s61, %s62
      %p71 = scmp.eq.s32.totalorder %s30, 0
      %p72 = por %p70, %p71
      %p73 = scmp.ne.s32.totalorder %s61, %s62
      %p74 = scmp.eq.s32.totalorder %s31, 1
      %p75 = por %p73, %p74
      %p77 = scmp.ne.s32.totalorder %s62, %s76
      %p78 = scmp.eq.s32.totalorder %s31, 0
      %p79 = por %p77, %p78
      %s81 = sadd.s32 %s80, 1
      %p84 = scmp.eq.s32.totalorder %s25, 1
      %p85 = scmp.ne.s32.totalorder %s80, %s82
      %p86 = scmp.eq.s32.totalorder %s25, 0
      %p87 = por %p85, %p86
      %p88 = scmp.ne.s32.totalorder %s80, %s82
      %p89 = scmp.eq.s32.totalorder %s30, 1
      %p90 = por %p88, %p89
      %p91 = scmp.ne.s32.totalorder %s82, %s83
      %p92 = scmp.eq.s32.totalorder %s30, 0
      %p93 = por %p91, %p92
      %p94 = scmp.ne.s32.totalorder %s82, %s83
      %p95 = scmp.eq.s32.totalorder %s31, 1
      %p96 = por %p94, %p95
      %p98 = scmp.ne.s32.totalorder %s83, %s97
      %p99 = scmp.eq.s32.totalorder %s31, 0
      %p100 = por %p98, %p99
      %s102 = sadd.s32 %s101, 1
      %p105 = scmp.eq.s32.totalorder %s25, 1
      %p106 = scmp.ne.s32.totalorder %s101, %s103
      %p107 = scmp.eq.s32.totalorder %s25, 0
      %p108 = por %p106, %p107
      %p109 = scmp.ne.s32.totalorder %s101, %s103
      %p110 = scmp.eq.s32.totalorder %s30, 1
      %p111 = por %p109, %p110
      %p112 = scmp.ne.s32.totalorder %s103, %s104
      %p113 = scmp.eq.s32.totalorder %s30, 0
      %p114 = por %p112, %p113
      %p115 = scmp.ne.s32.totalorder %s103, %s104
      %p116 = scmp.eq.s32.totalorder %s31, 1
      %p117 = por %p115, %p116
      %p119 = scmp.ne.s32.totalorder %s104, %s118
      %p120 = scmp.eq.s32.totalorder %s31, 0
      %p121 = por %p119, %p120
      %s123 = sadd.s32 %s122, 1
      %p126 = scmp.eq.s32.totalorder %s25, 1
      %p127 = scmp.ne.s32.totalorder %s122, %s124
      %p128 = scmp.eq.s32.totalorder %s25, 0
      %p129 = por %p127, %p128
      %p130 = scmp.ne.s32.totalorder %s122, %s124
      %p131 = scmp.eq.s32.totalorder %s30, 1
      %p132 = por %p130, %p131
      %p133 = scmp.ne.s32.totalorder %s124, %s125
      %p134 = scmp.eq.s32.totalorder %s30, 0
      %p135 = por %p133, %p134
      %p136 = scmp.ne.s32.totalorder %s124, %s125
      %p137 = scmp.eq.s32.totalorder %s31, 1
      %p138 = por %p136, %p137
      %p140 = scmp.ne.s32.totalorder %s125, %s139
      %p141 = scmp.eq.s32.totalorder %s31, 0
      %p142 = por %p140, %p141
      %s144 = sadd.s32 %s143, 1
      %p147 = scmp.eq.s32.totalorder %s25, 1
      %p148 = scmp.ne.s32.totalorder %s143, %s145
      %p149 = scmp.eq.s32.totalorder %s25, 0
      %p150 = por %p148, %p149
      %p151 = scmp.ne.s32.totalorder %s143, %s145
      %p152 = scmp.eq.s32.totalorder %s30, 1
      %p153 = por %p151, %p152
      %p154 = scmp.ne.s32.totalorder %s145, %s146
      %p155 = scmp.eq.s32.totalorder %s30, 0
      %p156 = por %p154, %p155
      %p157 = scmp.ne.s32.totalorder %s145, %s146
      %p158 = scmp.eq.s32.totalorder %s31, 1
      %p159 = por %p157, %p158
      %p161 = scmp.ne.s32.totalorder %s146, %s160
      %p162 = scmp.eq.s32.totalorder %s31, 0
      %p163 = por %p161, %p162
      %s165 = sadd.s32 %s164, 1
      %p168 = scmp.eq.s32.totalorder %s25, 1
      %p169 = scmp.ne.s32.totalorder %s164, %s166
      %p170 = scmp.eq.s32.totalorder %s25, 0
      %p171 = por %p169, %p170
      %p172 = scmp.ne.s32.totalorder %s164, %s166
      %p173 = scmp.eq.s32.totalorder %s30, 1
      %p174 = por %p172, %p173
      %p175 = scmp.ne.s32.totalorder %s166, %s167
      %p176 = scmp.eq.s32.totalorder %s30, 0
      %p177 = por %p175, %p176
      %p178 = scmp.ne.s32.totalorder %s166, %s167
      %p179 = scmp.eq.s32.totalorder %s31, 1
      %p180 = por %p178, %p179
      %p182 = scmp.ne.s32.totalorder %s167, %s181
      %p183 = scmp.eq.s32.totalorder %s31, 0
      %p184 = por %p182, %p183
      %s186 = sadd.s32 %s185, 1
      %p189 = scmp.eq.s32.totalorder %s25, 1
      %p190 = scmp.ne.s32.totalorder %s185, %s187
      %p191 = scmp.eq.s32.totalorder %s25, 0
      %p192 = por %p190, %p191
      %p193 = scmp.ne.s32.totalorder %s185, %s187
      %p194 = scmp.eq.s32.totalorder %s30, 1
      %p195 = por %p193, %p194
      %p196 = scmp.ne.s32.totalorder %s187, %s188
      %p197 = scmp.eq.s32.totalorder %s30, 0
      %p198 = por %p196, %p197
      %p199 = scmp.ne.s32.totalorder %s187, %s188
      %p200 = scmp.eq.s32.totalorder %s31, 1
      %p201 = por %p199, %p200
      %p203 = scmp.ne.s32.totalorder %s188, %s202
      %p204 = scmp.eq.s32.totalorder %s31, 0
      %p205 = por %p203, %p204
      %s207 = sadd.s32 %s206, 1
      %p210 = scmp.eq.s32.totalorder %s25, 1
      %p211 = scmp.ne.s32.totalorder %s206, %s208
      %p212 = scmp.eq.s32.totalorder %s25, 0
      %p213 = por %p211, %p212
      %p214 = scmp.ne.s32.totalorder %s206, %s208
      %p215 = scmp.eq.s32.totalorder %s30, 1
      %p216 = por %p214, %p215
      %p217 = scmp.ne.s32.totalorder %s208, %s209
      %p218 = scmp.eq.s32.totalorder %s30, 0
      %p219 = por %p217, %p218
      %p220 = scmp.ne.s32.totalorder %s208, %s209
      %p221 = scmp.eq.s32.totalorder %s31, 1
      %p222 = por %p220, %p221
      %p224 = scmp.ne.s32.totalorder %s209, %s223
      %p225 = scmp.eq.s32.totalorder %s31, 0
      %p226 = por %p224, %p225
      %s228 = sadd.s32 %s227, 1
      %p231 = scmp.eq.s32.totalorder %s25, 1
      %p232 = scmp.ne.s32.totalorder %s227, %s229
      %p233 = scmp.eq.s32.totalorder %s25, 0
      %p234 = por %p232, %p233
      %p235 = scmp.ne.s32.totalorder %s227, %s229
      %p236 = scmp.eq.s32.totalorder %s30, 1
      %p237 = por %p235, %p236
      %p238 = scmp.ne.s32.totalorder %s229, %s230
      %p239 = scmp.eq.s32.totalorder %s30, 0
      %p240 = por %p238, %p239
      %p241 = scmp.ne.s32.totalorder %s229, %s230
      %p242 = scmp.eq.s32.totalorder %s31, 1
      %p243 = por %p241, %p242
      %p245 = scmp.ne.s32.totalorder %s230, %s244
      %p246 = scmp.eq.s32.totalorder %s31, 0
      %p247 = por %p245, %p246
      %s249 = sadd.s32 %s248, 1
      %p252 = scmp.eq.s32.totalorder %s25, 1
      %p253 = scmp.ne.s32.totalorder %s248, %s250
      %p254 = scmp.eq.s32.totalorder %s25, 0
      %p255 = por %p253, %p254
      %p256 = scmp.ne.s32.totalorder %s248, %s250
      %p257 = scmp.eq.s32.totalorder %s30, 1
      %p258 = por %p256, %p257
      %p259 = scmp.ne.s32.totalorder %s250, %s251
      %p260 = scmp.eq.s32.totalorder %s30, 0
      %p261 = por %p259, %p260
      %p262 = scmp.ne.s32.totalorder %s250, %s251
      %p263 = scmp.eq.s32.totalorder %s31, 1
      %p264 = por %p262, %p263
      %p266 = scmp.ne.s32.totalorder %s251, %s265
      %p267 = scmp.eq.s32.totalorder %s31, 0
      %p268 = por %p266, %p267
      %s270 = sadd.s32 %s269, 1
      %p273 = scmp.eq.s32.totalorder %s25, 1
      %p274 = scmp.ne.s32.totalorder %s269, %s271
      %p275 = scmp.eq.s32.totalorder %s25, 0
      %p276 = por %p274, %p275
      %p277 = scmp.ne.s32.totalorder %s269, %s271
      %p278 = scmp.eq.s32.totalorder %s30, 1
      %p279 = por %p277, %p278
      %p280 = scmp.ne.s32.totalorder %s271, %s272
      %p281 = scmp.eq.s32.totalorder %s30, 0
      %p282 = por %p280, %p281
      %p283 = scmp.ne.s32.totalorder %s271, %s272
      %p284 = scmp.eq.s32.totalorder %s31, 1
      %p285 = por %p283, %p284
      %p287 = scmp.ne.s32.totalorder %s272, %s286
      %p288 = scmp.eq.s32.totalorder %s31, 0
      %p289 = por %p287, %p288
      %s290 = ssub.s32 %s25, %s32
      %p291 = scmp.eq.s32.totalorder %s290, 0
      %s293 = sadd.s32 %s292, 1
      %s294 = scalar_select %p291, %s292, %s293
      %p297 = pneg %p291
      %p298 = scmp.eq.s32.totalorder %s25, 1
      %p299 = por %p297, %p298
      %p300 = scmp.ne.s32.totalorder %s292, %s295
      %p301 = scmp.eq.s32.totalorder %s25, 0
      %p302 = por %p300, %p301
      %p303 = scmp.ne.s32.totalorder %s292, %s295
      %p304 = scmp.eq.s32.totalorder %s30, 1
      %p305 = por %p303, %p304
      %p306 = scmp.ne.s32.totalorder %s295, %s296
      %p307 = scmp.eq.s32.totalorder %s30, 0
      %p308 = por %p306, %p307
      %p309 = scmp.ne.s32.totalorder %s295, %s296
      %p310 = scmp.eq.s32.totalorder %s31, 1
      %p311 = por %p309, %p310
      %p313 = scmp.ne.s32.totalorder %s296, %s312
      %p314 = scmp.eq.s32.totalorder %s31, 0
      %p315 = por %p313, %p314
      %p316 = scmp.le.s32.totalorder 1, %s25
      %p317 = scmp.lt.s32.totalorder %s25, 3
      %p318 = pnand %p316, %p317
      %p319 = pneg %p318
      // Predicated region
      $region9: #{tpu_custom_call.1} parent=5 // pred_check
        _
      $region10: #{tpu_custom_call.1} parent=5 // pred_check_branch
        %321 = sbr.rel (%p318) target = $region12
      $region11: #{tpu_custom_call.1} parent=5 // pred_region
        %s322 = ssub.s32 %s25, 1
        // Predicated region
        $region13: #{tpu_custom_call.1} parent=11 // pred_check
          %p323 = pneg %p72
        $region14: #{tpu_custom_call.1} parent=11 // pred_check_branch
          %325 = sbr.rel (%p323) target = $region16
        $region15: #{tpu_custom_call.1} parent=11 // pred_region
          _
        $region16: #{tpu_custom_call.1} parent=11 // pred_fallthru
          _
        // Predicated region
        $region17: #{tpu_custom_call.1} parent=11 // pred_check
          %p326 = pneg %p93
        $region18: #{tpu_custom_call.1} parent=11 // pred_check_branch
          %328 = sbr.rel (%p326) target = $region20
        $region19: #{tpu_custom_call.1} parent=11 // pred_region
          _
        $region20: #{tpu_custom_call.1} parent=11 // pred_fallthru
          _
        // Predicated region
        $region21: #{tpu_custom_call.1} parent=11 // pred_check
          %p329 = pneg %p114
        $region22: #{tpu_custom_call.1} parent=11 // pred_check_branch
          %331 = sbr.rel (%p329) target = $region24
        $region23: #{tpu_custom_call.1} parent=11 // pred_region
          _
        $region24: #{tpu_custom_call.1} parent=11 // pred_fallthru
          _
        // Predicated region
        $region25: #{tpu_custom_call.1} parent=11 // pred_check
          %p332 = pneg %p135
        $region26: #{tpu_custom_call.1} parent=11 // pred_check_branch
          %334 = sbr.rel (%p332) target = $region28
        $region27: #{tpu_custom_call.1} parent=11 // pred_region
          %s336 = ssub.s32 16, 16
          %337 = vsyncadd [#allocation7], %s336
          %s339 = sshll.u32 [#allocation6], 4
          %s340 = int_to_ptr.vmem [resolvable:$true] %s339
          %342 = dma.hbm_to_vmem [thread:$0]  %s4, 16, %s340, [#allocation7]
        $region28: #{tpu_custom_call.1} parent=11 // pred_fallthru
          _
        // Predicated region
        $region29: #{tpu_custom_call.1} parent=11 // pred_check
          %p343 = pneg %p156
        $region30: #{tpu_custom_call.1} parent=11 // pred_check_branch
          %345 = sbr.rel (%p343) target = $region32
        $region31: #{tpu_custom_call.1} parent=11 // pred_region
          %s347 = ssub.s32 16, 16
          %348 = vsyncadd [#allocation7], %s347
          %s350 = sshll.u32 [#allocation8], 4
          %s351 = int_to_ptr.vmem [resolvable:$true] %s350
          %353 = dma.hbm_to_vmem [thread:$0]  %s5, 16, %s351, [#allocation7]
        $region32: #{tpu_custom_call.1} parent=11 // pred_fallthru
          _
        // Predicated region
        $region33: #{tpu_custom_call.1} parent=11 // pred_check
          %p354 = pneg %p177
        $region34: #{tpu_custom_call.1} parent=11 // pred_check_branch
          %356 = sbr.rel (%p354) target = $region36
        $region35: #{tpu_custom_call.1} parent=11 // pred_region
          _
        $region36: #{tpu_custom_call.1} parent=11 // pred_fallthru
          _
        // Predicated region
        $region37: #{tpu_custom_call.1} parent=11 // pred_check
          %p357 = pneg %p198
        $region38: #{tpu_custom_call.1} parent=11 // pred_check_branch
          %359 = sbr.rel (%p357) target = $region40
        $region39: #{tpu_custom_call.1} parent=11 // pred_region
          _
        $region40: #{tpu_custom_call.1} parent=11 // pred_fallthru
          _
        // Predicated region
        $region41: #{tpu_custom_call.1} parent=11 // pred_check
          %p360 = pneg %p219
        $region42: #{tpu_custom_call.1} parent=11 // pred_check_branch
          %362 = sbr.rel (%p360) target = $region44
        $region43: #{tpu_custom_call.1} parent=11 // pred_region
          _
        $region44: #{tpu_custom_call.1} parent=11 // pred_fallthru
          _
        // Predicated region
        $region45: #{tpu_custom_call.1} parent=11 // pred_check
          %p363 = pneg %p240
        $region46: #{tpu_custom_call.1} parent=11 // pred_check_branch
          %365 = sbr.rel (%p363) target = $region48
        $region47: #{tpu_custom_call.1} parent=11 // pred_region
          _
        $region48: #{tpu_custom_call.1} parent=11 // pred_fallthru
          _
        // Predicated region
        $region49: #{tpu_custom_call.1} parent=11 // pred_check
          %p366 = pneg %p261
        $region50: #{tpu_custom_call.1} parent=11 // pred_check_branch
          %368 = sbr.rel (%p366) target = $region52
        $region51: #{tpu_custom_call.1} parent=11 // pred_region
          _
        $region52: #{tpu_custom_call.1} parent=11 // pred_fallthru
          _
        // Predicated region
        $region53: #{tpu_custom_call.1} parent=11 // pred_check
          %p369 = pneg %p282
        $region54: #{tpu_custom_call.1} parent=11 // pred_check_branch
          %371 = sbr.rel (%p369) target = $region56
        $region55: #{tpu_custom_call.1} parent=11 // pred_region
          _
        $region56: #{tpu_custom_call.1} parent=11 // pred_fallthru
          _
      $region12: #{tpu_custom_call.1} parent=5 // pred_fallthru
        _
      %p372 = scmp.lt.s32.totalorder %s25, 2
      // Predicated region
      $region57: #{tpu_custom_call.1} parent=5 // pred_check
        %p373 = pneg %p372
      $region58: #{tpu_custom_call.1} parent=5 // pred_check_branch
        %375 = sbr.rel (%p373) target = $region60
      $region59: #{tpu_custom_call.1} parent=5 // pred_region
        // Predicated region
        $region61: #{tpu_custom_call.1} parent=59 // pred_check
          %p376 = pneg %p45
        $region62: #{tpu_custom_call.1} parent=59 // pred_check_branch
          %378 = sbr.rel (%p376) target = $region64
        $region63: #{tpu_custom_call.1} parent=59 // pred_region
          %s379 = sand.u32 %s35, 1
          %s380 = scalar_lea.sflag [#allocation4], %s379
          %s381 = sand.u32 %s35, 1
          %s382 = smul.addr %s381, 64
          %s383 = scalar_lea.vmem [#allocation3], %s382
          %s385 = ssub.s32 1024, 1024
          %386 = vsyncadd %s380, %s385
          %s387 = smul.addr %s25, 8
          %s388 = smul.addr %s387, 128
          %s389 = scalar_lea.hbm %s0, %s388
          %s390 = sshll.u32 %s383, 4
          %s391 = int_to_ptr.vmem [resolvable:$true] %s390
          %396 = dma.hbm_to_vmem [thread:$0]  %s389, 1024, %s391, %s380, 128, 128, 8
        $region64: #{tpu_custom_call.1} parent=59 // pred_fallthru
          _
      $region60: #{tpu_custom_call.1} parent=5 // pred_fallthru
        _
      %p397 = scmp.le.s32.totalorder 1, %s25
      %p398 = scmp.lt.s32.totalorder %s25, 3
      %p399 = pnand %p397, %p398
      %p400 = pneg %p399
      // Predicated region
      $region65: #{tpu_custom_call.1} parent=5 // pred_check
        _
      $region66: #{tpu_custom_call.1} parent=5 // pred_check_branch
        %402 = sbr.rel (%p399) target = $region68
      $region67: #{tpu_custom_call.1} parent=5 // pred_region
        %s403 = ssub.s32 %s25, 1
        %s404 = sand.u32 %s38, 1
        %s405 = scalar_lea.sflag [#allocation4], %s404
        %s406 = sand.u32 %s38, 1
        %s407 = smul.addr %s406, 64
        %s408 = scalar_lea.vmem [#allocation3], %s407
        // Predicated region
        $region69: #{tpu_custom_call.1} parent=67 // pred_check
          %p409 = pneg %p51
        $region70: #{tpu_custom_call.1} parent=67 // pred_check_branch
          %411 = sbr.rel (%p409) target = $region72
        $region71: #{tpu_custom_call.1} parent=67 // pred_region
          %412 = dma.done %s405, 1024
        $region72: #{tpu_custom_call.1} parent=67 // pred_fallthru
          _
        // Predicated region
        $region73: #{tpu_custom_call.1} parent=67 // pred_check
          %p413 = pneg %p135
        $region74: #{tpu_custom_call.1} parent=67 // pred_check_branch
          %415 = sbr.rel (%p413) target = $region76
        $region75: #{tpu_custom_call.1} parent=67 // pred_region
          %416 = dma.done [#allocation7], 16
        $region76: #{tpu_custom_call.1} parent=67 // pred_fallthru
          _
        // Predicated region
        $region77: #{tpu_custom_call.1} parent=67 // pred_check
          %p417 = pneg %p156
        $region78: #{tpu_custom_call.1} parent=67 // pred_check_branch
          %419 = sbr.rel (%p417) target = $region80
        $region79: #{tpu_custom_call.1} parent=67 // pred_region
          %420 = dma.done [#allocation7], 16
        $region80: #{tpu_custom_call.1} parent=67 // pred_fallthru
          _
        %s421 = sand.u32 %s38, 1
        %s422 = scalar_lea.sflag [#allocation4], %s421
        %s423 = sand.u32 %s38, 1
        %s424 = smul.addr %s423, 64
        %s425 = scalar_lea.vmem [#allocation3], %s424
        %p426 = pneg %p51
        %p427 = pneg %p48
        %p428 = pneg %p72
        %p429 = pneg %p69
        %p430 = pneg %p93
        %p431 = pneg %p90
        %p432 = pneg %p114
        %p433 = pneg %p111
        %p434 = pneg %p135
        %p435 = pneg %p132
        %p436 = pneg %p156
        %p437 = pneg %p153
        %p438 = pneg %p177
        %p439 = pneg %p174
        %p440 = pneg %p198
        %p441 = pneg %p195
        %p442 = pneg %p219
        %p443 = pneg %p216
        %p444 = pneg %p240
        %p445 = pneg %p237
        %p446 = pneg %p261
        %p447 = pneg %p258
        %p448 = pneg %p282
        %p449 = pneg %p279
        %p450 = pneg %p308
        %p451 = pneg %p305
        %s452 = sand.u32 %s295, 1
        %s453 = scalar_lea.sflag [#allocation5], %s452
        %s454 = sand.u32 %s295, 1
        %s455 = smul.addr %s454, 64
        %s456 = scalar_lea.vmem [#allocation9], %s455
        %v458 = vld [vmem:[%s408] sm:$0xff]
        %v459 = vld [vmem:[%s408 + $0x8] sm:$0xff]
        %v460 = vld [vmem:[%s408 + $0x10] sm:$0xff]
        %v461 = vld [vmem:[%s408 + $0x18] sm:$0xff]
        %v462 = vld [vmem:[%s408 + $0x20] sm:$0xff]
        %v463 = vld [vmem:[%s408 + $0x28] sm:$0xff]
        %v464 = vld [vmem:[%s408 + $0x30] sm:$0xff]
        %v465 = vld [vmem:[%s408 + $0x38] sm:$0xff]
        %v466 = vld [vmem:[%s1] sm:$0x1]
        %v468 = vlaneseq
        %v469 = vshrl.u32 %v468, 7
        %v470 = vsub.s32 0, %v469
        %v471 = vrot.slane %v466, %v470
        %v473 = vmul.f32 %v458, %v471
        %v474 = vmul.f32 %v459, %v471
        %v475 = vmul.f32 %v460, %v471
        %v476 = vmul.f32 %v461, %v471
        %v477 = vmul.f32 %v462, %v471
        %v478 = vmul.f32 %v463, %v471
        %v479 = vmul.f32 %v464, %v471
        %v480 = vmul.f32 %v465, %v471
        %v481 = vld [vmem:[%s2] sm:$0x1]
        %v483 = vlaneseq
        %v484 = vshrl.u32 %v483, 7
        %v485 = vsub.s32 0, %v484
        %v486 = vrot.slane %v481, %v485
        %v488 = vadd.f32 %v473, %v486
        %v489 = vadd.f32 %v474, %v486
        %v490 = vadd.f32 %v475, %v486
        %v491 = vadd.f32 %v476, %v486
        %v492 = vadd.f32 %v477, %v486
        %v493 = vadd.f32 %v478, %v486
        %v494 = vadd.f32 %v479, %v486
        %v495 = vadd.f32 %v480, %v486
        %v496 = vmax.f32 %v488, 0.0
        %v497 = vmax.f32 %v489, 0.0
        %v498 = vmax.f32 %v490, 0.0
        %v499 = vmax.f32 %v491, 0.0
        %v500 = vmax.f32 %v492, 0.0
        %v501 = vmax.f32 %v493, 0.0
        %v502 = vmax.f32 %v494, 0.0
        %v503 = vmax.f32 %v495, 0.0
        %v504 = vpack.c.bf16 %v497, %v496
        %v505 = vpack.c.bf16 %v499, %v498
        %v506 = vpack.c.bf16 %v501, %v500
        %v507 = vpack.c.bf16 %v503, %v502
        %v508 = vld [vmem:[%s3] sm:$0xf]
        %v509 = vld [vmem:[%s3 + $0x4] sm:$0xf]
        %v512 = vunpack.c.l.b16 %v508
        %v513 = vunpack.c.l.b16 %v509
        %v514 = vpack.c.b16 %v513, %v512
        %vm516 = vcmask 130048
        %v518 = vsel %vm516, %v504, 0
        %v521 = vsel %vm516, %v505, 0
        %v524 = vsel %vm516, %v506, 0
        %v527 = vsel %vm516, %v507, 0
        %529 = vmatprep.subr.bf16.mxu0 0
        %530 = vmatpush1.bf16.msra.mxu0 %v514
        %531 = vmatprep.subr.bf16.mxu0 0
        %532 = vmatpush1.bf16.msra.mxu0 0
        %533 = vmatprep.subr.bf16.mxu0 0
        %534 = vmatpush1.bf16.msra.mxu0 0
        %535 = vmatprep.subr.bf16.mxu0 0
        %536 = vmatpush1.bf16.msra.mxu0 0
        %537 = vmatprep.subr.bf16.mxu0 0
        %538 = vmatpush1.bf16.msra.mxu0 0
        %539 = vmatprep.subr.bf16.mxu0 0
        %540 = vmatpush1.bf16.msra.mxu0 0
        %541 = vmatprep.subr.bf16.mxu0 0
        %542 = vmatpush1.bf16.msra.mxu0 0
        %543 = vmatprep.subr.bf16.mxu0 0
        %544 = vmatpush1.bf16.msra.mxu0 0
        %545 = vmatprep.subr.bf16.mxu0 0
        %546 = vmatpush1.bf16.msra.mxu0 0
        %547 = vmatprep.subr.bf16.mxu0 0
        %548 = vmatpush1.bf16.msra.mxu0 0
        %549 = vmatprep.subr.bf16.mxu0 0
        %550 = vmatpush1.bf16.msra.mxu0 0
        %551 = vmatprep.subr.bf16.mxu0 0
        %552 = vmatpush1.bf16.msra.mxu0 0
        %553 = vmatprep.subr.bf16.mxu0 0
        %554 = vmatpush1.bf16.msra.mxu0 0
        %555 = vmatprep.subr.bf16.mxu0 0
        %556 = vmatpush1.bf16.msra.mxu0 0
        %557 = vmatprep.subr.bf16.mxu0 0
        %558 = vmatpush1.bf16.msra.mxu0 0
        %559 = vmatprep.subr.bf16.mxu0 0
        %560 = vmatpush1.bf16.msra.mxu0 0
        %561 = vmatprep.mubr.bf16.mxu0 0
        %562 = vmatmul.mubr.bf16.gmra.mrb[0].mxu0 %v518
        %v563 = vpop.f32.mrb[0].mxu0
        %v564 = vadd.f32 0.0, %v563
        %v565 = vpop.f32.mrb[0].mxu0
        %v566 = vpop.f32.mrb[0].mxu0
        %v567 = vadd.f32 0.0, %v566
        %v568 = vpop.f32.mrb[0].mxu0
        %569 = vmatprep.mubr.bf16.mxu0 0
        %570 = vmatmul.mubr.bf16.gmra.mrb[0].mxu0 %v521
        %v571 = vpop.f32.mrb[0].mxu0
        %v572 = vadd.f32 0.0, %v571
        %v573 = vpop.f32.mrb[0].mxu0
        %v574 = vpop.f32.mrb[0].mxu0
        %v575 = vadd.f32 0.0, %v574
        %v576 = vpop.f32.mrb[0].mxu0
        %577 = vmatprep.mubr.bf16.mxu0 0
        %578 = vmatmul.mubr.bf16.gmra.mrb[0].mxu0 %v524
        %v579 = vpop.f32.mrb[0].mxu0
        %v580 = vadd.f32 0.0, %v579
        %v581 = vpop.f32.mrb[0].mxu0
        %v582 = vpop.f32.mrb[0].mxu0
        %v583 = vadd.f32 0.0, %v582
        %v584 = vpop.f32.mrb[0].mxu0
        %585 = vmatprep.mubr.bf16.mxu0 0
        %586 = vmatmul.mubr.bf16.gmra.mrb[0].mxu0 %v527
        %v587 = vpop.f32.mrb[0].mxu0
        %v588 = vadd.f32 0.0, %v587
        %v589 = vpop.f32.mrb[0].mxu0
        %v590 = vpop.f32.mrb[0].mxu0
        %v591 = vadd.f32 0.0, %v590
        %v592 = vpop.f32.mrb[0].mxu0
        %593 = vdwg.mxu0
        %v594 = vld [vmem:[#allocation6] sm:$0x1]
        %v596 = vlaneseq
        %v597 = vshrl.u32 %v596, 7
        %v598 = vsub.s32 0, %v597
        %v599 = vrot.slane %v594, %v598
        %v601 = vmul.f32 %v564, %v599
        %v602 = vmul.f32 %v567, %v599
        %v603 = vmul.f32 %v572, %v599
        %v604 = vmul.f32 %v575, %v599
        %v605 = vmul.f32 %v580, %v599
        %v606 = vmul.f32 %v583, %v599
        %v607 = vmul.f32 %v588, %v599
        %v608 = vmul.f32 %v591, %v599
        %v609 = vld [vmem:[#allocation8] sm:$0x1]
        %v611 = vlaneseq
        %v612 = vshrl.u32 %v611, 7
        %v613 = vsub.s32 0, %v612
        %v614 = vrot.slane %v609, %v613
        %v616 = vadd.f32 %v601, %v614
        %v617 = vadd.f32 %v602, %v614
        %v618 = vadd.f32 %v603, %v614
        %v619 = vadd.f32 %v604, %v614
        %v620 = vadd.f32 %v605, %v614
        %v621 = vadd.f32 %v606, %v614
        %v622 = vadd.f32 %v607, %v614
        %v623 = vadd.f32 %v608, %v614
        %v624 = vmax.f32 %v616, 0.0
        %v625 = vmax.f32 %v617, 0.0
        %v626 = vmax.f32 %v618, 0.0
        %v627 = vmax.f32 %v619, 0.0
        %v628 = vmax.f32 %v620, 0.0
        %v629 = vmax.f32 %v621, 0.0
        %v630 = vmax.f32 %v622, 0.0
        %v631 = vmax.f32 %v623, 0.0
        %v632 = vpack.c.bf16 %v625, %v624
        %v633 = vpack.c.bf16 %v627, %v626
        %v634 = vpack.c.bf16 %v629, %v628
        %v635 = vpack.c.bf16 %v631, %v630
        %vm636 = vcmask 31744
        %637 = vst.msk [vmem:[#allocation2] sm:$0xff] %vm636, 0
        %638 = vst.msk [vmem:[#allocation2 + $0x8] sm:$0xff] %vm636, 0
        %639 = vst.msk [vmem:[#allocation2 + $0x10] sm:$0xff] %vm636, 0
        %640 = vst.msk [vmem:[#allocation2 + $0x18] sm:$0xff] %vm636, 0
        %641 = vst.msk [vmem:[#allocation2 + $0x20] sm:$0xff] %vm636, 0
        %642 = vst.msk [vmem:[#allocation2 + $0x28] sm:$0xff] %vm636, 0
        %643 = vst.msk [vmem:[#allocation2 + $0x30] sm:$0xff] %vm636, 0
        %644 = vst.msk [vmem:[#allocation2 + $0x38] sm:$0xff] %vm636, 0
        %645 = vst.msk [vmem:[#allocation2 + $0x40] sm:$0xff] %vm636, 0
        %646 = vst.msk [vmem:[#allocation2 + $0x48] sm:$0xff] %vm636, 0
        %647 = vst.msk [vmem:[#allocation2 + $0x50] sm:$0xff] %vm636, 0
        %648 = vst.msk [vmem:[#allocation2 + $0x58] sm:$0xff] %vm636, 0
        %v653 = vunpack.c.l.b16 %v632
        %v654 = vunpack.c.h.b16 %v632
        %v655 = vunpack.c.l.b16 %v633
        %v656 = vunpack.c.h.b16 %v633
        %v657 = vunpack.c.l.b16 %v634
        %v658 = vunpack.c.h.b16 %v634
        %v659 = vunpack.c.l.b16 %v635
        %v660 = vunpack.c.h.b16 %v635
        %v661 = vpack.c.b16 %v653, %v653
        %v662 = vpack.c.b16 %v654, %v654
        %v663 = vpack.c.b16 %v655, %v655
        %v664 = vpack.c.b16 %v656, %v656
        %v665 = vpack.c.b16 %v657, %v657
        %v666 = vpack.c.b16 %v658, %v658
        %v667 = vpack.c.b16 %v659, %v659
        %v668 = vpack.c.b16 %v660, %v660
        %vm677 = vcmask 27648
        %678 = vst.msk [vmem:[#allocation2 + $0x10] sm:$0xf] %vm677, %v661
        %679 = vst.msk [vmem:[#allocation2 + $0x18] sm:$0xf] %vm677, %v662
        %680 = vst.msk [vmem:[#allocation2 + $0x20] sm:$0xf] %vm677, %v663
        %681 = vst.msk [vmem:[#allocation2 + $0x28] sm:$0xf] %vm677, %v664
        %682 = vst.msk [vmem:[#allocation2 + $0x30] sm:$0xf] %vm677, %v665
        %683 = vst.msk [vmem:[#allocation2 + $0x38] sm:$0xf] %vm677, %v666
        %684 = vst.msk [vmem:[#allocation2 + $0x40] sm:$0xf] %vm677, %v667
        %685 = vst.msk [vmem:[#allocation2 + $0x48] sm:$0xf] %vm677, %v668
        %v686 = vld [vmem:[#allocation2] sm:$0x80]
        %v687 = vld [vmem:[#allocation2 + $0x8] sm:$0xff]
        %v688 = vld [vmem:[#allocation2 + $0x10] sm:$0xff]
        %v689 = vld [vmem:[#allocation2 + $0x18] sm:$0xff]
        %v690 = vld [vmem:[#allocation2 + $0x20] sm:$0xff]
        %v691 = vld [vmem:[#allocation2 + $0x28] sm:$0xff]
        %v692 = vld [vmem:[#allocation2 + $0x30] sm:$0xff]
        %v693 = vld [vmem:[#allocation2 + $0x38] sm:$0xff]
        %v694 = vld [vmem:[#allocation2 + $0x40] sm:$0xff]
        %v695 = vld [vmem:[#allocation2 + $0x48] sm:$0xff]
        %v696 = vld [vmem:[#allocation2 + $0x50] sm:$0xff]
        %v697 = vld [vmem:[%s6] sm:$0x3]
        %s698 = scalar_lea.vmem %s6, 6
        %v699 = vld [vmem:[%s698] sm:$0x3]
        %vm700 = vsmask.f32 256
        %v702 = vshrl.u32 %v687, 16
        %v704 = vrot.slane %v702, 7
        %v706 = vshrl.u32 %v688, 16
        %v708 = vrot.slane %v706, 7
        %v709 = vshll.u32 %v688, 16
        %v711 = vor.u32 %v708, %v709
        %v712 = vsel %vm700, %v704, %v711
        %v714 = vshrl.u32 %v689, 16
        %v716 = vrot.slane %v714, 7
        %v717 = vshll.u32 %v689, 16
        %v719 = vor.u32 %v716, %v717
        %v720 = vsel %vm700, %v708, %v719
        %v722 = vshrl.u32 %v690, 16
        %v724 = vrot.slane %v722, 7
        %v725 = vshll.u32 %v690, 16
        %v727 = vor.u32 %v724, %v725
        %v728 = vsel %vm700, %v716, %v727
        %v730 = vshrl.u32 %v691, 16
        %v732 = vrot.slane %v730, 7
        %v733 = vshll.u32 %v691, 16
        %v735 = vor.u32 %v732, %v733
        %v736 = vsel %vm700, %v724, %v735
        %v738 = vshrl.u32 %v692, 16
        %v740 = vrot.slane %v738, 7
        %v741 = vshll.u32 %v692, 16
        %v743 = vor.u32 %v740, %v741
        %v744 = vsel %vm700, %v732, %v743
        %v746 = vshrl.u32 %v693, 16
        %v748 = vrot.slane %v746, 7
        %v749 = vshll.u32 %v693, 16
        %v751 = vor.u32 %v748, %v749
        %v752 = vsel %vm700, %v740, %v751
        %v754 = vshrl.u32 %v694, 16
        %v756 = vrot.slane %v754, 7
        %v757 = vshll.u32 %v694, 16
        %v759 = vor.u32 %v756, %v757
        %v760 = vsel %vm700, %v748, %v759
        %v762 = vshrl.u32 %v695, 16
        %v764 = vrot.slane %v762, 7
        %v765 = vshll.u32 %v695, 16
        %v767 = vor.u32 %v764, %v765
        %v768 = vsel %vm700, %v756, %v767
        %v770 = vsel %vm636, %v712, 0
        %v773 = vsel %vm636, %v720, 0
        %v776 = vsel %vm636, %v728, 0
        %v779 = vsel %vm636, %v736, 0
        %v782 = vsel %vm636, %v744, 0
        %v785 = vsel %vm636, %v752, 0
        %v788 = vsel %vm636, %v760, 0
        %v791 = vsel %vm636, %v768, 0
        %vm793 = vcmask 1041408
        %v795 = vsel %vm793, %v699, 0
        %797 = vmatprep.subr.bf16.mxu0 0
        %798 = vmatpush1.bf16.msra.mxu0 %v795
        %799 = vmatprep.subr.bf16.mxu0 0
        %800 = vmatpush1.bf16.msra.mxu0 0
        %801 = vmatprep.subr.bf16.mxu0 0
        %802 = vmatpush1.bf16.msra.mxu0 0
        %803 = vmatprep.subr.bf16.mxu0 0
        %804 = vmatpush1.bf16.msra.mxu0 0
        %805 = vmatprep.subr.bf16.mxu0 0
        %806 = vmatpush1.bf16.msra.mxu0 0
        %807 = vmatprep.subr.bf16.mxu0 0
        %808 = vmatpush1.bf16.msra.mxu0 0
        %809 = vmatprep.subr.bf16.mxu0 0
        %810 = vmatpush1.bf16.msra.mxu0 0
        %811 = vmatprep.subr.bf16.mxu0 0
        %812 = vmatpush1.bf16.msra.mxu0 0
        %813 = vmatprep.subr.bf16.mxu0 0
        %814 = vmatpush1.bf16.msra.mxu0 0
        %815 = vmatprep.subr.bf16.mxu0 0
        %816 = vmatpush1.bf16.msra.mxu0 0
        %817 = vmatprep.subr.bf16.mxu0 0
        %818 = vmatpush1.bf16.msra.mxu0 0
        %819 = vmatprep.subr.bf16.mxu0 0
        %820 = vmatpush1.bf16.msra.mxu0 0
        %821 = vmatprep.subr.bf16.mxu0 0
        %822 = vmatpush1.bf16.msra.mxu0 0
        %823 = vmatprep.subr.bf16.mxu0 0
        %824 = vmatpush1.bf16.msra.mxu0 0
        %825 = vmatprep.subr.bf16.mxu0 0
        %826 = vmatpush1.bf16.msra.mxu0 0
        %827 = vmatprep.subr.bf16.mxu0 0
        %828 = vmatpush1.bf16.msra.mxu0 0
        %829 = vmatprep.mubr.bf16.mxu0 0
        %830 = vmatmul.mubr.bf16.gmra.mrb[0].mxu0 %v770
        %v831 = vpop.f32.mrb[0].mxu0
        %v832 = vadd.f32 0.0, %v831
        %v833 = vpop.f32.mrb[0].mxu0
        %v834 = vpop.f32.mrb[0].mxu0
        %v835 = vpop.f32.mrb[0].mxu0
        %836 = vmatprep.mubr.bf16.mxu0 0
        %837 = vmatmul.mubr.bf16.gmra.mrb[0].mxu0 %v773
        %v838 = vpop.f32.mrb[0].mxu0
        %v839 = vadd.f32 0.0, %v838
        %v840 = vpop.f32.mrb[0].mxu0
        %v841 = vpop.f32.mrb[0].mxu0
        %v842 = vpop.f32.mrb[0].mxu0
        %843 = vmatprep.mubr.bf16.mxu0 0
        %844 = vmatmul.mubr.bf16.gmra.mrb[0].mxu0 %v776
        %v845 = vpop.f32.mrb[0].mxu0
        %v846 = vadd.f32 0.0, %v845
        %v847 = vpop.f32.mrb[0].mxu0
        %v848 = vpop.f32.mrb[0].mxu0
        %v849 = vpop.f32.mrb[0].mxu0
        %850 = vmatprep.mubr.bf16.mxu0 0
        %851 = vmatmul.mubr.bf16.gmra.mrb[0].mxu0 %v779
        %v852 = vpop.f32.mrb[0].mxu0
        %v853 = vadd.f32 0.0, %v852
        %v854 = vpop.f32.mrb[0].mxu0
        %v855 = vpop.f32.mrb[0].mxu0
        %v856 = vpop.f32.mrb[0].mxu0
        %857 = vmatprep.mubr.bf16.mxu0 0
        %858 = vmatmul.mubr.bf16.gmra.mrb[0].mxu0 %v782
        %v859 = vpop.f32.mrb[0].mxu0
        %v860 = vadd.f32 0.0, %v859
        %v861 = vpop.f32.mrb[0].mxu0
        %v862 = vpop.f32.mrb[0].mxu0
        %v863 = vpop.f32.mrb[0].mxu0
        %864 = vmatprep.mubr.bf16.mxu0 0
        %865 = vmatmul.mubr.bf16.gmra.mrb[0].mxu0 %v785
        %v866 = vpop.f32.mrb[0].mxu0
        %v867 = vadd.f32 0.0, %v866
        %v868 = vpop.f32.mrb[0].mxu0
        %v869 = vpop.f32.mrb[0].mxu0
        %v870 = vpop.f32.mrb[0].mxu0
        %871 = vmatprep.mubr.bf16.mxu0 0
        %872 = vmatmul.mubr.bf16.gmra.mrb[0].mxu0 %v788
        %v873 = vpop.f32.mrb[0].mxu0
        %v874 = vadd.f32 0.0, %v873
        %v875 = vpop.f32.mrb[0].mxu0
        %v876 = vpop.f32.mrb[0].mxu0
        %v877 = vpop.f32.mrb[0].mxu0
        %878 = vmatprep.mubr.bf16.mxu0 0
        %879 = vmatmul.mubr.bf16.gmra.mrb[0].mxu0 %v791
        %v880 = vpop.f32.mrb[0].mxu0
        %v881 = vadd.f32 0.0, %v880
        %v882 = vpop.f32.mrb[0].mxu0
        %v883 = vpop.f32.mrb[0].mxu0
        %v884 = vpop.f32.mrb[0].mxu0
        %885 = vdwg.mxu0
        %v887 = vshrl.u32 %v686, 16
        %v889 = vrot.slane %v887, 7
        %v890 = vshll.u32 %v687, 16
        %v892 = vor.u32 %v704, %v890
        %v893 = vsel %vm700, %v889, %v892
        %v895 = vsel %vm636, %v893, 0
        %v898 = vsel %vm793, %v697, 0
        %900 = vmatprep.subr.bf16.mxu0 0
        %901 = vmatpush1.bf16.msra.mxu0 %v898
        %902 = vmatprep.subr.bf16.mxu0 0
        %903 = vmatpush1.bf16.msra.mxu0 0
        %904 = vmatprep.subr.bf16.mxu0 0
        %905 = vmatpush1.bf16.msra.mxu0 0
        %906 = vmatprep.subr.bf16.mxu0 0
        %907 = vmatpush1.bf16.msra.mxu0 0
        %908 = vmatprep.subr.bf16.mxu0 0
        %909 = vmatpush1.bf16.msra.mxu0 0
        %910 = vmatprep.subr.bf16.mxu0 0
        %911 = vmatpush1.bf16.msra.mxu0 0
        %912 = vmatprep.subr.bf16.mxu0 0
        %913 = vmatpush1.bf16.msra.mxu0 0
        %914 = vmatprep.subr.bf16.mxu0 0
        %915 = vmatpush1.bf16.msra.mxu0 0
        %916 = vmatprep.subr.bf16.mxu0 0
        %917 = vmatpush1.bf16.msra.mxu0 0
        %918 = vmatprep.subr.bf16.mxu0 0
        %919 = vmatpush1.bf16.msra.mxu0 0
        %920 = vmatprep.subr.bf16.mxu0 0
        %921 = vmatpush1.bf16.msra.mxu0 0
        %922 = vmatprep.subr.bf16.mxu0 0
        %923 = vmatpush1.bf16.msra.mxu0 0
        %924 = vmatprep.subr.bf16.mxu0 0
        %925 = vmatpush1.bf16.msra.mxu0 0
        %926 = vmatprep.subr.bf16.mxu0 0
        %927 = vmatpush1.bf16.msra.mxu0 0
        %928 = vmatprep.subr.bf16.mxu0 0
        %929 = vmatpush1.bf16.msra.mxu0 0
        %930 = vmatprep.subr.bf16.mxu0 0
        %931 = vmatpush1.bf16.msra.mxu0 0
        %932 = vmatprep.mubr.bf16.mxu0 0
        %933 = vmatmul.mubr.bf16.gmra.mrb[0].mxu0 %v895
        %v934 = vpop.f32.mrb[0].mxu0
        %v935 = vadd.f32 %v832, %v934
        %v936 = vpop.f32.mrb[0].mxu0
        %v937 = vpop.f32.mrb[0].mxu0
        %v938 = vpop.f32.mrb[0].mxu0
        %939 = vmatprep.mubr.bf16.mxu0 0
        %940 = vmatmul.mubr.bf16.gmra.mrb[0].mxu0 %v770
        %v941 = vpop.f32.mrb[0].mxu0
        %v942 = vadd.f32 %v839, %v941
        %v943 = vpop.f32.mrb[0].mxu0
        %v944 = vpop.f32.mrb[0].mxu0
        %v945 = vpop.f32.mrb[0].mxu0
        %946 = vmatprep.mubr.bf16.mxu0 0
        %947 = vmatmul.mubr.bf16.gmra.mrb[0].mxu0 %v773
        %v948 = vpop.f32.mrb[0].mxu0
        %v949 = vadd.f32 %v846, %v948
        %v950 = vpop.f32.mrb[0].mxu0
        %v951 = vpop.f32.mrb[0].mxu0
        %v952 = vpop.f32.mrb[0].mxu0
        %953 = vmatprep.mubr.bf16.mxu0 0
        %954 = vmatmul.mubr.bf16.gmra.mrb[0].mxu0 %v776
        %v955 = vpop.f32.mrb[0].mxu0
        %v956 = vadd.f32 %v853, %v955
        %v957 = vpop.f32.mrb[0].mxu0
        %v958 = vpop.f32.mrb[0].mxu0
        %v959 = vpop.f32.mrb[0].mxu0
        %960 = vmatprep.mubr.bf16.mxu0 0
        %961 = vmatmul.mubr.bf16.gmra.mrb[0].mxu0 %v779
        %v962 = vpop.f32.mrb[0].mxu0
        %v963 = vadd.f32 %v860, %v962
        %v964 = vpop.f32.mrb[0].mxu0
        %v965 = vpop.f32.mrb[0].mxu0
        %v966 = vpop.f32.mrb[0].mxu0
        %967 = vmatprep.mubr.bf16.mxu0 0
        %968 = vmatmul.mubr.bf16.gmra.mrb[0].mxu0 %v782
        %v969 = vpop.f32.mrb[0].mxu0
        %v970 = vadd.f32 %v867, %v969
        %v971 = vpop.f32.mrb[0].mxu0
        %v972 = vpop.f32.mrb[0].mxu0
        %v973 = vpop.f32.mrb[0].mxu0
        %974 = vmatprep.mubr.bf16.mxu0 0
        %975 = vmatmul.mubr.bf16.gmra.mrb[0].mxu0 %v785
        %v976 = vpop.f32.mrb[0].mxu0
        %v977 = vadd.f32 %v874, %v976
        %v978 = vpop.f32.mrb[0].mxu0
        %v979 = vpop.f32.mrb[0].mxu0
        %v980 = vpop.f32.mrb[0].mxu0
        %981 = vmatprep.mubr.bf16.mxu0 0
        %982 = vmatmul.mubr.bf16.gmra.mrb[0].mxu0 %v788
        %v983 = vpop.f32.mrb[0].mxu0
        %v984 = vadd.f32 %v881, %v983
        %v985 = vpop.f32.mrb[0].mxu0
        %v986 = vpop.f32.mrb[0].mxu0
        %v987 = vpop.f32.mrb[0].mxu0
        %988 = vdwg.mxu0
        %s989 = scalar_lea.vmem %s6, 12
        %v990 = vld [vmem:[%s989] sm:$0x3]
        %v992 = vshrl.u32 %v696, 16
        %v994 = vrot.slane %v992, 7
        %v995 = vshll.u32 %v696, 16
        %v997 = vor.u32 %v994, %v995
        %v998 = vsel %vm700, %v764, %v997
        %v1000 = vsel %vm636, %v998, 0
        %v1003 = vsel %vm793, %v990, 0
        %1005 = vmatprep.subr.bf16.mxu0 0
        %1006 = vmatpush1.bf16.msra.mxu0 %v1003
        %1007 = vmatprep.subr.bf16.mxu0 0
        %1008 = vmatpush1.bf16.msra.mxu0 0
        %1009 = vmatprep.subr.bf16.mxu0 0
        %1010 = vmatpush1.bf16.msra.mxu0 0
        %1011 = vmatprep.subr.bf16.mxu0 0
        %1012 = vmatpush1.bf16.msra.mxu0 0
        %1013 = vmatprep.subr.bf16.mxu0 0
        %1014 = vmatpush1.bf16.msra.mxu0 0
        %1015 = vmatprep.subr.bf16.mxu0 0
        %1016 = vmatpush1.bf16.msra.mxu0 0
        %1017 = vmatprep.subr.bf16.mxu0 0
        %1018 = vmatpush1.bf16.msra.mxu0 0
        %1019 = vmatprep.subr.bf16.mxu0 0
        %1020 = vmatpush1.bf16.msra.mxu0 0
        %1021 = vmatprep.subr.bf16.mxu0 0
        %1022 = vmatpush1.bf16.msra.mxu0 0
        %1023 = vmatprep.subr.bf16.mxu0 0
        %1024 = vmatpush1.bf16.msra.mxu0 0
        %1025 = vmatprep.subr.bf16.mxu0 0
        %1026 = vmatpush1.bf16.msra.mxu0 0
        %1027 = vmatprep.subr.bf16.mxu0 0
        %1028 = vmatpush1.bf16.msra.mxu0 0
        %1029 = vmatprep.subr.bf16.mxu0 0
        %1030 = vmatpush1.bf16.msra.mxu0 0
        %1031 = vmatprep.subr.bf16.mxu0 0
        %1032 = vmatpush1.bf16.msra.mxu0 0
        %1033 = vmatprep.subr.bf16.mxu0 0
        %1034 = vmatpush1.bf16.msra.mxu0 0
        %1035 = vmatprep.subr.bf16.mxu0 0
        %1036 = vmatpush1.bf16.msra.mxu0 0
        %1037 = vmatprep.mubr.bf16.mxu0 0
        %1038 = vmatmul.mubr.bf16.gmra.mrb[0].mxu0 %v773
        %v1039 = vpop.f32.mrb[0].mxu0
        %v1040 = vadd.f32 0.0, %v1039
        %v1041 = vpop.f32.mrb[0].mxu0
        %v1042 = vpop.f32.mrb[0].mxu0
        %v1043 = vpop.f32.mrb[0].mxu0
        %1044 = vmatprep.mubr.bf16.mxu0 0
        %1045 = vmatmul.mubr.bf16.gmra.mrb[0].mxu0 %v776
        %v1046 = vpop.f32.mrb[0].mxu0
        %v1047 = vadd.f32 0.0, %v1046
        %v1048 = vpop.f32.mrb[0].mxu0
        %v1049 = vpop.f32.mrb[0].mxu0
        %v1050 = vpop.f32.mrb[0].mxu0
        %1051 = vmatprep.mubr.bf16.mxu0 0
        %1052 = vmatmul.mubr.bf16.gmra.mrb[0].mxu0 %v779
        %v1053 = vpop.f32.mrb[0].mxu0
        %v1054 = vadd.f32 0.0, %v1053
        %v1055 = vpop.f32.mrb[0].mxu0
        %v1056 = vpop.f32.mrb[0].mxu0
        %v1057 = vpop.f32.mrb[0].mxu0
        %1058 = vmatprep.mubr.bf16.mxu0 0
        %1059 = vmatmul.mubr.bf16.gmra.mrb[0].mxu0 %v782
        %v1060 = vpop.f32.mrb[0].mxu0
        %v1061 = vadd.f32 0.0, %v1060
        %v1062 = vpop.f32.mrb[0].mxu0
        %v1063 = vpop.f32.mrb[0].mxu0
        %v1064 = vpop.f32.mrb[0].mxu0
        %1065 = vmatprep.mubr.bf16.mxu0 0
        %1066 = vmatmul.mubr.bf16.gmra.mrb[0].mxu0 %v785
        %v1067 = vpop.f32.mrb[0].mxu0
        %v1068 = vadd.f32 0.0, %v1067
        %v1069 = vpop.f32.mrb[0].mxu0
        %v1070 = vpop.f32.mrb[0].mxu0
        %v1071 = vpop.f32.mrb[0].mxu0
        %1072 = vmatprep.mubr.bf16.mxu0 0
        %1073 = vmatmul.mubr.bf16.gmra.mrb[0].mxu0 %v788
        %v1074 = vpop.f32.mrb[0].mxu0
        %v1075 = vadd.f32 0.0, %v1074
        %v1076 = vpop.f32.mrb[0].mxu0
        %v1077 = vpop.f32.mrb[0].mxu0
        %v1078 = vpop.f32.mrb[0].mxu0
        %1079 = vmatprep.mubr.bf16.mxu0 0
        %1080 = vmatmul.mubr.bf16.gmra.mrb[0].mxu0 %v791
        %v1081 = vpop.f32.mrb[0].mxu0
        %v1082 = vadd.f32 0.0, %v1081
        %v1083 = vpop.f32.mrb[0].mxu0
        %v1084 = vpop.f32.mrb[0].mxu0
        %v1085 = vpop.f32.mrb[0].mxu0
        %1086 = vmatprep.mubr.bf16.mxu0 0
        %1087 = vmatmul.mubr.bf16.gmra.mrb[0].mxu0 %v1000
        %v1088 = vpop.f32.mrb[0].mxu0
        %v1089 = vadd.f32 0.0, %v1088
        %v1090 = vpop.f32.mrb[0].mxu0
        %v1091 = vpop.f32.mrb[0].mxu0
        %v1092 = vpop.f32.mrb[0].mxu0
        %1093 = vdwg.mxu0
        %v1094 = vadd.f32 %v935, %v1040
        %v1095 = vadd.f32 %v942, %v1047
        %v1096 = vadd.f32 %v949, %v1054
        %v1097 = vadd.f32 %v956, %v1061
        %v1098 = vadd.f32 %v963, %v1068
        %v1099 = vadd.f32 %v970, %v1075
        %v1100 = vadd.f32 %v977, %v1082
        %v1101 = vadd.f32 %v984, %v1089
        %s1102 = scalar_lea.vmem %s6, 2
        %v1103 = vld [vmem:[%s1102] sm:$0x3]
        %v1104 = vsel %vm636, %v687, 0
        %v1106 = vsel %vm636, %v688, 0
        %v1108 = vsel %vm636, %v689, 0
        %v1110 = vsel %vm636, %v690, 0
        %v1112 = vsel %vm636, %v691, 0
        %v1114 = vsel %vm636, %v692, 0
        %v1116 = vsel %vm636, %v693, 0
        %v1118 = vsel %vm636, %v694, 0
        %v1121 = vsel %vm793, %v1103, 0
        %1123 = vmatprep.subr.bf16.mxu0 0
        %1124 = vmatpush1.bf16.msra.mxu0 %v1121
        %1125 = vmatprep.subr.bf16.mxu0 0
        %1126 = vmatpush1.bf16.msra.mxu0 0
        %1127 = vmatprep.subr.bf16.mxu0 0
        %1128 = vmatpush1.bf16.msra.mxu0 0
        %1129 = vmatprep.subr.bf16.mxu0 0
        %1130 = vmatpush1.bf16.msra.mxu0 0
        %1131 = vmatprep.subr.bf16.mxu0 0
        %1132 = vmatpush1.bf16.msra.mxu0 0
        %1133 = vmatprep.subr.bf16.mxu0 0
        %1134 = vmatpush1.bf16.msra.mxu0 0
        %1135 = vmatprep.subr.bf16.mxu0 0
        %1136 = vmatpush1.bf16.msra.mxu0 0
        %1137 = vmatprep.subr.bf16.mxu0 0
        %1138 = vmatpush1.bf16.msra.mxu0 0
        %1139 = vmatprep.subr.bf16.mxu0 0
        %1140 = vmatpush1.bf16.msra.mxu0 0
        %1141 = vmatprep.subr.bf16.mxu0 0
        %1142 = vmatpush1.bf16.msra.mxu0 0
        %1143 = vmatprep.subr.bf16.mxu0 0
        %1144 = vmatpush1.bf16.msra.mxu0 0
        %1145 = vmatprep.subr.bf16.mxu0 0
        %1146 = vmatpush1.bf16.msra.mxu0 0
        %1147 = vmatprep.subr.bf16.mxu0 0
        %1148 = vmatpush1.bf16.msra.mxu0 0
        %1149 = vmatprep.subr.bf16.mxu0 0
        %1150 = vmatpush1.bf16.msra.mxu0 0
        %1151 = vmatprep.subr.bf16.mxu0 0
        %1152 = vmatpush1.bf16.msra.mxu0 0
        %1153 = vmatprep.subr.bf16.mxu0 0
        %1154 = vmatpush1.bf16.msra.mxu0 0
        %1155 = vmatprep.mubr.bf16.mxu0 0
        %1156 = vmatmul.mubr.bf16.gmra.mrb[0].mxu0 %v1104
        %v1157 = vpop.f32.mrb[0].mxu0
        %v1158 = vadd.f32 0.0, %v1157
        %v1159 = vpop.f32.mrb[0].mxu0
        %v1160 = vpop.f32.mrb[0].mxu0
        %v1161 = vpop.f32.mrb[0].mxu0
        %1162 = vmatprep.mubr.bf16.mxu0 0
        %1163 = vmatmul.mubr.bf16.gmra.mrb[0].mxu0 %v1106
        %v1164 = vpop.f32.mrb[0].mxu0
        %v1165 = vadd.f32 0.0, %v1164
        %v1166 = vpop.f32.mrb[0].mxu0
        %v1167 = vpop.f32.mrb[0].mxu0
        %v1168 = vpop.f32.mrb[0].mxu0
        %1169 = vmatprep.mubr.bf16.mxu0 0
        %1170 = vmatmul.mubr.bf16.gmra.mrb[0].mxu0 %v1108
        %v1171 = vpop.f32.mrb[0].mxu0
        %v1172 = vadd.f32 0.0, %v1171
        %v1173 = vpop.f32.mrb[0].mxu0
        %v1174 = vpop.f32.mrb[0].mxu0
        %v1175 = vpop.f32.mrb[0].mxu0
        %1176 = vmatprep.mubr.bf16.mxu0 0
        %1177 = vmatmul.mubr.bf16.gmra.mrb[0].mxu0 %v1110
        %v1178 = vpop.f32.mrb[0].mxu0
        %v1179 = vadd.f32 0.0, %v1178
        %v1180 = vpop.f32.mrb[0].mxu0
        %v1181 = vpop.f32.mrb[0].mxu0
        %v1182 = vpop.f32.mrb[0].mxu0
        %1183 = vmatprep.mubr.bf16.mxu0 0
        %1184 = vmatmul.mubr.bf16.gmra.mrb[0].mxu0 %v1112
        %v1185 = vpop.f32.mrb[0].mxu0
        %v1186 = vadd.f32 0.0, %v1185
        %v1187 = vpop.f32.mrb[0].mxu0
        %v1188 = vpop.f32.mrb[0].mxu0
        %v1189 = vpop.f32.mrb[0].mxu0
        %1190 = vmatprep.mubr.bf16.mxu0 0
        %1191 = vmatmul.mubr.bf16.gmra.mrb[0].mxu0 %v1114
        %v1192 = vpop.f32.mrb[0].mxu0
        %v1193 = vadd.f32 0.0, %v1192
        %v1194 = vpop.f32.mrb[0].mxu0
        %v1195 = vpop.f32.mrb[0].mxu0
        %v1196 = vpop.f32.mrb[0].mxu0
        %1197 = vmatprep.mubr.bf16.mxu0 0
        %1198 = vmatmul.mubr.bf16.gmra.mrb[0].mxu0 %v1116
        %v1199 = vpop.f32.mrb[0].mxu0
        %v1200 = vadd.f32 0.0, %v1199
        %v1201 = vpop.f32.mrb[0].mxu0
        %v1202 = vpop.f32.mrb[0].mxu0
        %v1203 = vpop.f32.mrb[0].mxu0
        %1204 = vmatprep.mubr.bf16.mxu0 0
        %1205 = vmatmul.mubr.bf16.gmra.mrb[0].mxu0 %v1118
        %v1206 = vpop.f32.mrb[0].mxu0
        %v1207 = vadd.f32 0.0, %v1206
        %v1208 = vpop.f32.mrb[0].mxu0
        %v1209 = vpop.f32.mrb[0].mxu0
        %v1210 = vpop.f32.mrb[0].mxu0
        %1211 = vdwg.mxu0
        %v1212 = vadd.f32 %v1094, %v1158
        %v1213 = vadd.f32 %v1095, %v1165
        %v1214 = vadd.f32 %v1096, %v1172
        %v1215 = vadd.f32 %v1097, %v1179
        %v1216 = vadd.f32 %v1098, %v1186
        %v1217 = vadd.f32 %v1099, %v1193
        %v1218 = vadd.f32 %v1100, %v1200
        %v1219 = vadd.f32 %v1101, %v1207
        %s1220 = scalar_lea.vmem %s6, 8
        %v1221 = vld [vmem:[%s1220] sm:$0x3]
        %v1222 = vsel %vm636, %v695, 0
        %v1225 = vsel %vm793, %v1221, 0
        %1227 = vmatprep.subr.bf16.mxu0 0
        %1228 = vmatpush1.bf16.msra.mxu0 %v1225
        %1229 = vmatprep.subr.bf16.mxu0 0
        %1230 = vmatpush1.bf16.msra.mxu0 0
        %1231 = vmatprep.subr.bf16.mxu0 0
        %1232 = vmatpush1.bf16.msra.mxu0 0
        %1233 = vmatprep.subr.bf16.mxu0 0
        %1234 = vmatpush1.bf16.msra.mxu0 0
        %1235 = vmatprep.subr.bf16.mxu0 0
        %1236 = vmatpush1.bf16.msra.mxu0 0
        %1237 = vmatprep.subr.bf16.mxu0 0
        %1238 = vmatpush1.bf16.msra.mxu0 0
        %1239 = vmatprep.subr.bf16.mxu0 0
        %1240 = vmatpush1.bf16.msra.mxu0 0
        %1241 = vmatprep.subr.bf16.mxu0 0
        %1242 = vmatpush1.bf16.msra.mxu0 0
        %1243 = vmatprep.subr.bf16.mxu0 0
        %1244 = vmatpush1.bf16.msra.mxu0 0
        %1245 = vmatprep.subr.bf16.mxu0 0
        %1246 = vmatpush1.bf16.msra.mxu0 0
        %1247 = vmatprep.subr.bf16.mxu0 0
        %1248 = vmatpush1.bf16.msra.mxu0 0
        %1249 = vmatprep.subr.bf16.mxu0 0
        %1250 = vmatpush1.bf16.msra.mxu0 0
        %1251 = vmatprep.subr.bf16.mxu0 0
        %1252 = vmatpush1.bf16.msra.mxu0 0
        %1253 = vmatprep.subr.bf16.mxu0 0
        %1254 = vmatpush1.bf16.msra.mxu0 0
        %1255 = vmatprep.subr.bf16.mxu0 0
        %1256 = vmatpush1.bf16.msra.mxu0 0
        %1257 = vmatprep.subr.bf16.mxu0 0
        %1258 = vmatpush1.bf16.msra.mxu0 0
        %1259 = vmatprep.mubr.bf16.mxu0 0
        %1260 = vmatmul.mubr.bf16.gmra.mrb[0].mxu0 %v1106
        %v1261 = vpop.f32.mrb[0].mxu0
        %v1262 = vadd.f32 0.0, %v1261
        %v1263 = vpop.f32.mrb[0].mxu0
        %v1264 = vpop.f32.mrb[0].mxu0
        %v1265 = vpop.f32.mrb[0].mxu0
        %1266 = vmatprep.mubr.bf16.mxu0 0
        %1267 = vmatmul.mubr.bf16.gmra.mrb[0].mxu0 %v1108
        %v1268 = vpop.f32.mrb[0].mxu0
        %v1269 = vadd.f32 0.0, %v1268
        %v1270 = vpop.f32.mrb[0].mxu0
        %v1271 = vpop.f32.mrb[0].mxu0
        %v1272 = vpop.f32.mrb[0].mxu0
        %1273 = vmatprep.mubr.bf16.mxu0 0
        %1274 = vmatmul.mubr.bf16.gmra.mrb[0].mxu0 %v1110
        %v1275 = vpop.f32.mrb[0].mxu0
        %v1276 = vadd.f32 0.0, %v1275
        %v1277 = vpop.f32.mrb[0].mxu0
        %v1278 = vpop.f32.mrb[0].mxu0
        %v1279 = vpop.f32.mrb[0].mxu0
        %1280 = vmatprep.mubr.bf16.mxu0 0
        %1281 = vmatmul.mubr.bf16.gmra.mrb[0].mxu0 %v1112
        %v1282 = vpop.f32.mrb[0].mxu0
        %v1283 = vadd.f32 0.0, %v1282
        %v1284 = vpop.f32.mrb[0].mxu0
        %v1285 = vpop.f32.mrb[0].mxu0
        %v1286 = vpop.f32.mrb[0].mxu0
        %1287 = vmatprep.mubr.bf16.mxu0 0
        %1288 = vmatmul.mubr.bf16.gmra.mrb[0].mxu0 %v1114
        %v1289 = vpop.f32.mrb[0].mxu0
        %v1290 = vadd.f32 0.0, %v1289
        %v1291 = vpop.f32.mrb[0].mxu0
        %v1292 = vpop.f32.mrb[0].mxu0
        %v1293 = vpop.f32.mrb[0].mxu0
        %1294 = vmatprep.mubr.bf16.mxu0 0
        %1295 = vmatmul.mubr.bf16.gmra.mrb[0].mxu0 %v1116
        %v1296 = vpop.f32.mrb[0].mxu0
        %v1297 = vadd.f32 0.0, %v1296
        %v1298 = vpop.f32.mrb[0].mxu0
        %v1299 = vpop.f32.mrb[0].mxu0
        %v1300 = vpop.f32.mrb[0].mxu0
        %1301 = vmatprep.mubr.bf16.mxu0 0
        %1302 = vmatmul.mubr.bf16.gmra.mrb[0].mxu0 %v1118
        %v1303 = vpop.f32.mrb[0].mxu0
        %v1304 = vadd.f32 0.0, %v1303
        %v1305 = vpop.f32.mrb[0].mxu0
        %v1306 = vpop.f32.mrb[0].mxu0
        %v1307 = vpop.f32.mrb[0].mxu0
        %1308 = vmatprep.mubr.bf16.mxu0 0
        %1309 = vmatmul.mubr.bf16.gmra.mrb[0].mxu0 %v1222
        %v1310 = vpop.f32.mrb[0].mxu0
        %v1311 = vadd.f32 0.0, %v1310
        %v1312 = vpop.f32.mrb[0].mxu0
        %v1313 = vpop.f32.mrb[0].mxu0
        %v1314 = vpop.f32.mrb[0].mxu0
        %1315 = vdwg.mxu0
        %v1316 = vadd.f32 %v1212, %v1262
        %v1317 = vadd.f32 %v1213, %v1269
        %v1318 = vadd.f32 %v1214, %v1276
        %v1319 = vadd.f32 %v1215, %v1283
        %v1320 = vadd.f32 %v1216, %v1290
        %v1321 = vadd.f32 %v1217, %v1297
        %v1322 = vadd.f32 %v1218, %v1304
        %v1323 = vadd.f32 %v1219, %v1311
        %s1324 = scalar_lea.vmem %s6, 14
        %v1325 = vld [vmem:[%s1324] sm:$0x3]
        %v1326 = vsel %vm636, %v696, 0
        %v1329 = vsel %vm793, %v1325, 0
        %1331 = vmatprep.subr.bf16.mxu0 0
        %1332 = vmatpush1.bf16.msra.mxu0 %v1329
        %1333 = vmatprep.subr.bf16.mxu0 0
        %1334 = vmatpush1.bf16.msra.mxu0 0
        %1335 = vmatprep.subr.bf16.mxu0 0
        %1336 = vmatpush1.bf16.msra.mxu0 0
        %1337 = vmatprep.subr.bf16.mxu0 0
        %1338 = vmatpush1.bf16.msra.mxu0 0
        %1339 = vmatprep.subr.bf16.mxu0 0
        %1340 = vmatpush1.bf16.msra.mxu0 0
        %1341 = vmatprep.subr.bf16.mxu0 0
        %1342 = vmatpush1.bf16.msra.mxu0 0
        %1343 = vmatprep.subr.bf16.mxu0 0
        %1344 = vmatpush1.bf16.msra.mxu0 0
        %1345 = vmatprep.subr.bf16.mxu0 0
        %1346 = vmatpush1.bf16.msra.mxu0 0
        %1347 = vmatprep.subr.bf16.mxu0 0
        %1348 = vmatpush1.bf16.msra.mxu0 0
        %1349 = vmatprep.subr.bf16.mxu0 0
        %1350 = vmatpush1.bf16.msra.mxu0 0
        %1351 = vmatprep.subr.bf16.mxu0 0
        %1352 = vmatpush1.bf16.msra.mxu0 0
        %1353 = vmatprep.subr.bf16.mxu0 0
        %1354 = vmatpush1.bf16.msra.mxu0 0
        %1355 = vmatprep.subr.bf16.mxu0 0
        %1356 = vmatpush1.bf16.msra.mxu0 0
        %1357 = vmatprep.subr.bf16.mxu0 0
        %1358 = vmatpush1.bf16.msra.mxu0 0
        %1359 = vmatprep.subr.bf16.mxu0 0
        %1360 = vmatpush1.bf16.msra.mxu0 0
        %1361 = vmatprep.subr.bf16.mxu0 0
        %1362 = vmatpush1.bf16.msra.mxu0 0
        %1363 = vmatprep.mubr.bf16.mxu0 0
        %1364 = vmatmul.mubr.bf16.gmra.mrb[0].mxu0 %v1108
        %v1365 = vpop.f32.mrb[0].mxu0
        %v1366 = vadd.f32 0.0, %v1365
        %v1367 = vpop.f32.mrb[0].mxu0
        %v1368 = vpop.f32.mrb[0].mxu0
        %v1369 = vpop.f32.mrb[0].mxu0
        %1370 = vmatprep.mubr.bf16.mxu0 0
        %1371 = vmatmul.mubr.bf16.gmra.mrb[0].mxu0 %v1110
        %v1372 = vpop.f32.mrb[0].mxu0
        %v1373 = vadd.f32 0.0, %v1372
        %v1374 = vpop.f32.mrb[0].mxu0
        %v1375 = vpop.f32.mrb[0].mxu0
        %v1376 = vpop.f32.mrb[0].mxu0
        %1377 = vmatprep.mubr.bf16.mxu0 0
        %1378 = vmatmul.mubr.bf16.gmra.mrb[0].mxu0 %v1112
        %v1379 = vpop.f32.mrb[0].mxu0
        %v1380 = vadd.f32 0.0, %v1379
        %v1381 = vpop.f32.mrb[0].mxu0
        %v1382 = vpop.f32.mrb[0].mxu0
        %v1383 = vpop.f32.mrb[0].mxu0
        %1384 = vmatprep.mubr.bf16.mxu0 0
        %1385 = vmatmul.mubr.bf16.gmra.mrb[0].mxu0 %v1114
        %v1386 = vpop.f32.mrb[0].mxu0
        %v1387 = vadd.f32 0.0, %v1386
        %v1388 = vpop.f32.mrb[0].mxu0
        %v1389 = vpop.f32.mrb[0].mxu0
        %v1390 = vpop.f32.mrb[0].mxu0
        %1391 = vmatprep.mubr.bf16.mxu0 0
        %1392 = vmatmul.mubr.bf16.gmra.mrb[0].mxu0 %v1116
        %v1393 = vpop.f32.mrb[0].mxu0
        %v1394 = vadd.f32 0.0, %v1393
        %v1395 = vpop.f32.mrb[0].mxu0
        %v1396 = vpop.f32.mrb[0].mxu0
        %v1397 = vpop.f32.mrb[0].mxu0
        %1398 = vmatprep.mubr.bf16.mxu0 0
        %1399 = vmatmul.mubr.bf16.gmra.mrb[0].mxu0 %v1118
        %v1400 = vpop.f32.mrb[0].mxu0
        %v1401 = vadd.f32 0.0, %v1400
        %v1402 = vpop.f32.mrb[0].mxu0
        %v1403 = vpop.f32.mrb[0].mxu0
        %v1404 = vpop.f32.mrb[0].mxu0
        %1405 = vmatprep.mubr.bf16.mxu0 0
        %1406 = vmatmul.mubr.bf16.gmra.mrb[0].mxu0 %v1222
        %v1407 = vpop.f32.mrb[0].mxu0
        %v1408 = vadd.f32 0.0, %v1407
        %v1409 = vpop.f32.mrb[0].mxu0
        %v1410 = vpop.f32.mrb[0].mxu0
        %v1411 = vpop.f32.mrb[0].mxu0
        %1412 = vmatprep.mubr.bf16.mxu0 0
        %1413 = vmatmul.mubr.bf16.gmra.mrb[0].mxu0 %v1326
        %v1414 = vpop.f32.mrb[0].mxu0
        %v1415 = vadd.f32 0.0, %v1414
        %v1416 = vpop.f32.mrb[0].mxu0
        %v1417 = vpop.f32.mrb[0].mxu0
        %v1418 = vpop.f32.mrb[0].mxu0
        %1419 = vdwg.mxu0
        %v1420 = vadd.f32 %v1316, %v1366
        %v1421 = vadd.f32 %v1317, %v1373
        %v1422 = vadd.f32 %v1318, %v1380
        %v1423 = vadd.f32 %v1319, %v1387
        %v1424 = vadd.f32 %v1320, %v1394
        %v1425 = vadd.f32 %v1321, %v1401
        %v1426 = vadd.f32 %v1322, %v1408
        %v1427 = vadd.f32 %v1323, %v1415
        %v1428 = vld [vmem:[#allocation2 + $0x8] sm:$0xff]
        %v1429 = vld [vmem:[#allocation2 + $0x10] sm:$0xff]
        %v1430 = vld [vmem:[#allocation2 + $0x18] sm:$0xff]
        %v1431 = vld [vmem:[#allocation2 + $0x20] sm:$0xff]
        %v1432 = vld [vmem:[#allocation2 + $0x28] sm:$0xff]
        %v1433 = vld [vmem:[#allocation2 + $0x30] sm:$0xff]
        %v1434 = vld [vmem:[#allocation2 + $0x38] sm:$0xff]
        %v1435 = vld [vmem:[#allocation2 + $0x40] sm:$0xff]
        %v1436 = vld [vmem:[#allocation2 + $0x48] sm:$0xff]
        %v1437 = vld [vmem:[#allocation2 + $0x50] sm:$0xff]
        %v1438 = vld [vmem:[#allocation2 + $0x58] sm:$0x1]
        %s1439 = scalar_lea.vmem %s6, 4
        %v1440 = vld [vmem:[%s1439] sm:$0x3]
        %vm1441 = vsmask.f32 7424
        %v1443 = vshrl.u32 %v1428, 16
        %v1445 = vshll.u32 %v1428, 16
        %v1447 = vrot.slane %v1445, 1
        %v1448 = vor.u32 %v1443, %v1447
        %v1450 = vshll.u32 %v1429, 16
        %v1452 = vrot.slane %v1450, 1
        %v1453 = vsel %vm1441, %v1448, %v1452
        %v1454 = vshrl.u32 %v1429, 16
        %v1456 = vor.u32 %v1454, %v1452
        %v1458 = vshll.u32 %v1430, 16
        %v1460 = vrot.slane %v1458, 1
        %v1461 = vsel %vm1441, %v1456, %v1460
        %v1462 = vshrl.u32 %v1430, 16
        %v1464 = vor.u32 %v1462, %v1460
        %v1466 = vshll.u32 %v1431, 16
        %v1468 = vrot.slane %v1466, 1
        %v1469 = vsel %vm1441, %v1464, %v1468
        %v1470 = vshrl.u32 %v1431, 16
        %v1472 = vor.u32 %v1470, %v1468
        %v1474 = vshll.u32 %v1432, 16
        %v1476 = vrot.slane %v1474, 1
        %v1477 = vsel %vm1441, %v1472, %v1476
        %v1478 = vshrl.u32 %v1432, 16
        %v1480 = vor.u32 %v1478, %v1476
        %v1482 = vshll.u32 %v1433, 16
        %v1484 = vrot.slane %v1482, 1
        %v1485 = vsel %vm1441, %v1480, %v1484
        %v1486 = vshrl.u32 %v1433, 16
        %v1488 = vor.u32 %v1486, %v1484
        %v1490 = vshll.u32 %v1434, 16
        %v1492 = vrot.slane %v1490, 1
        %v1493 = vsel %vm1441, %v1488, %v1492
        %v1494 = vshrl.u32 %v1434, 16
        %v1496 = vor.u32 %v1494, %v1492
        %v1498 = vshll.u32 %v1435, 16
        %v1500 = vrot.slane %v1498, 1
        %v1501 = vsel %vm1441, %v1496, %v1500
        %v1502 = vshrl.u32 %v1435, 16
        %v1504 = vor.u32 %v1502, %v1500
        %v1506 = vshll.u32 %v1436, 16
        %v1508 = vrot.slane %v1506, 1
        %v1509 = vsel %vm1441, %v1504, %v1508
        %v1511 = vsel %vm636, %v1453, 0
        %v1514 = vsel %vm636, %v1461, 0
        %v1517 = vsel %vm636, %v1469, 0
        %v1520 = vsel %vm636, %v1477, 0
        %v1523 = vsel %vm636, %v1485, 0
        %v1526 = vsel %vm636, %v1493, 0
        %v1529 = vsel %vm636, %v1501, 0
        %v1532 = vsel %vm636, %v1509, 0
        %v1535 = vsel %vm793, %v1440, 0
        %1537 = vmatprep.subr.bf16.mxu0 0
        %1538 = vmatpush1.bf16.msra.mxu0 %v1535
        %1539 = vmatprep.subr.bf16.mxu0 0
        %1540 = vmatpush1.bf16.msra.mxu0 0
        %1541 = vmatprep.subr.bf16.mxu0 0
        %1542 = vmatpush1.bf16.msra.mxu0 0
        %1543 = vmatprep.subr.bf16.mxu0 0
        %1544 = vmatpush1.bf16.msra.mxu0 0
        %1545 = vmatprep.subr.bf16.mxu0 0
        %1546 = vmatpush1.bf16.msra.mxu0 0
        %1547 = vmatprep.subr.bf16.mxu0 0
        %1548 = vmatpush1.bf16.msra.mxu0 0
        %1549 = vmatprep.subr.bf16.mxu0 0
        %1550 = vmatpush1.bf16.msra.mxu0 0
        %1551 = vmatprep.subr.bf16.mxu0 0
        %1552 = vmatpush1.bf16.msra.mxu0 0
        %1553 = vmatprep.subr.bf16.mxu0 0
        %1554 = vmatpush1.bf16.msra.mxu0 0
        %1555 = vmatprep.subr.bf16.mxu0 0
        %1556 = vmatpush1.bf16.msra.mxu0 0
        %1557 = vmatprep.subr.bf16.mxu0 0
        %1558 = vmatpush1.bf16.msra.mxu0 0
        %1559 = vmatprep.subr.bf16.mxu0 0
        %1560 = vmatpush1.bf16.msra.mxu0 0
        %1561 = vmatprep.subr.bf16.mxu0 0
        %1562 = vmatpush1.bf16.msra.mxu0 0
        %1563 = vmatprep.subr.bf16.mxu0 0
        %1564 = vmatpush1.bf16.msra.mxu0 0
        %1565 = vmatprep.subr.bf16.mxu0 0
        %1566 = vmatpush1.bf16.msra.mxu0 0
        %1567 = vmatprep.subr.bf16.mxu0 0
        %1568 = vmatpush1.bf16.msra.mxu0 0
        %1569 = vmatprep.mubr.bf16.mxu0 0
        %1570 = vmatmul.mubr.bf16.gmra.mrb[0].mxu0 %v1511
        %v1571 = vpop.f32.mrb[0].mxu0
        %v1572 = vadd.f32 0.0, %v1571
        %v1573 = vpop.f32.mrb[0].mxu0
        %v1574 = vpop.f32.mrb[0].mxu0
        %v1575 = vpop.f32.mrb[0].mxu0
        %1576 = vmatprep.mubr.bf16.mxu0 0
        %1577 = vmatmul.mubr.bf16.gmra.mrb[0].mxu0 %v1514
        %v1578 = vpop.f32.mrb[0].mxu0
        %v1579 = vadd.f32 0.0, %v1578
        %v1580 = vpop.f32.mrb[0].mxu0
        %v1581 = vpop.f32.mrb[0].mxu0
        %v1582 = vpop.f32.mrb[0].mxu0
        %1583 = vmatprep.mubr.bf16.mxu0 0
        %1584 = vmatmul.mubr.bf16.gmra.mrb[0].mxu0 %v1517
        %v1585 = vpop.f32.mrb[0].mxu0
        %v1586 = vadd.f32 0.0, %v1585
        %v1587 = vpop.f32.mrb[0].mxu0
        %v1588 = vpop.f32.mrb[0].mxu0
        %v1589 = vpop.f32.mrb[0].mxu0
        %1590 = vmatprep.mubr.bf16.mxu0 0
        %1591 = vmatmul.mubr.bf16.gmra.mrb[0].mxu0 %v1520
        %v1592 = vpop.f32.mrb[0].mxu0
        %v1593 = vadd.f32 0.0, %v1592
        %v1594 = vpop.f32.mrb[0].mxu0
        %v1595 = vpop.f32.mrb[0].mxu0
        %v1596 = vpop.f32.mrb[0].mxu0
        %1597 = vmatprep.mubr.bf16.mxu0 0
        %1598 = vmatmul.mubr.bf16.gmra.mrb[0].mxu0 %v1523
        %v1599 = vpop.f32.mrb[0].mxu0
        %v1600 = vadd.f32 0.0, %v1599
        %v1601 = vpop.f32.mrb[0].mxu0
        %v1602 = vpop.f32.mrb[0].mxu0
        %v1603 = vpop.f32.mrb[0].mxu0
        %1604 = vmatprep.mubr.bf16.mxu0 0
        %1605 = vmatmul.mubr.bf16.gmra.mrb[0].mxu0 %v1526
        %v1606 = vpop.f32.mrb[0].mxu0
        %v1607 = vadd.f32 0.0, %v1606
        %v1608 = vpop.f32.mrb[0].mxu0
        %v1609 = vpop.f32.mrb[0].mxu0
        %v1610 = vpop.f32.mrb[0].mxu0
        %1611 = vmatprep.mubr.bf16.mxu0 0
        %1612 = vmatmul.mubr.bf16.gmra.mrb[0].mxu0 %v1529
        %v1613 = vpop.f32.mrb[0].mxu0
        %v1614 = vadd.f32 0.0, %v1613
        %v1615 = vpop.f32.mrb[0].mxu0
        %v1616 = vpop.f32.mrb[0].mxu0
        %v1617 = vpop.f32.mrb[0].mxu0
        %1618 = vmatprep.mubr.bf16.mxu0 0
        %1619 = vmatmul.mubr.bf16.gmra.mrb[0].mxu0 %v1532
        %v1620 = vpop.f32.mrb[0].mxu0
        %v1621 = vadd.f32 0.0, %v1620
        %v1622 = vpop.f32.mrb[0].mxu0
        %v1623 = vpop.f32.mrb[0].mxu0
        %v1624 = vpop.f32.mrb[0].mxu0
        %1625 = vdwg.mxu0
        %v1626 = vadd.f32 %v1420, %v1572
        %v1627 = vadd.f32 %v1421, %v1579
        %v1628 = vadd.f32 %v1422, %v1586
        %v1629 = vadd.f32 %v1423, %v1593
        %v1630 = vadd.f32 %v1424, %v1600
        %v1631 = vadd.f32 %v1425, %v1607
        %v1632 = vadd.f32 %v1426, %v1614
        %v1633 = vadd.f32 %v1427, %v1621
        %s1634 = scalar_lea.vmem %s6, 10
        %v1635 = vld [vmem:[%s1634] sm:$0x3]
        %v1636 = vshrl.u32 %v1436, 16
        %v1638 = vor.u32 %v1636, %v1508
        %v1640 = vshll.u32 %v1437, 16
        %v1642 = vrot.slane %v1640, 1
        %v1643 = vsel %vm1441, %v1638, %v1642
        %v1645 = vsel %vm636, %v1643, 0
        %v1648 = vsel %vm793, %v1635, 0
        %1650 = vmatprep.subr.bf16.mxu0 0
        %1651 = vmatpush1.bf16.msra.mxu0 %v1648
        %1652 = vmatprep.subr.bf16.mxu0 0
        %1653 = vmatpush1.bf16.msra.mxu0 0
        %1654 = vmatprep.subr.bf16.mxu0 0
        %1655 = vmatpush1.bf16.msra.mxu0 0
        %1656 = vmatprep.subr.bf16.mxu0 0
        %1657 = vmatpush1.bf16.msra.mxu0 0
        %1658 = vmatprep.subr.bf16.mxu0 0
        %1659 = vmatpush1.bf16.msra.mxu0 0
        %1660 = vmatprep.subr.bf16.mxu0 0
        %1661 = vmatpush1.bf16.msra.mxu0 0
        %1662 = vmatprep.subr.bf16.mxu0 0
        %1663 = vmatpush1.bf16.msra.mxu0 0
        %1664 = vmatprep.subr.bf16.mxu0 0
        %1665 = vmatpush1.bf16.msra.mxu0 0
        %1666 = vmatprep.subr.bf16.mxu0 0
        %1667 = vmatpush1.bf16.msra.mxu0 0
        %1668 = vmatprep.subr.bf16.mxu0 0
        %1669 = vmatpush1.bf16.msra.mxu0 0
        %1670 = vmatprep.subr.bf16.mxu0 0
        %1671 = vmatpush1.bf16.msra.mxu0 0
        %1672 = vmatprep.subr.bf16.mxu0 0
        %1673 = vmatpush1.bf16.msra.mxu0 0
        %1674 = vmatprep.subr.bf16.mxu0 0
        %1675 = vmatpush1.bf16.msra.mxu0 0
        %1676 = vmatprep.subr.bf16.mxu0 0
        %1677 = vmatpush1.bf16.msra.mxu0 0
        %1678 = vmatprep.subr.bf16.mxu0 0
        %1679 = vmatpush1.bf16.msra.mxu0 0
        %1680 = vmatprep.subr.bf16.mxu0 0
        %1681 = vmatpush1.bf16.msra.mxu0 0
        %1682 = vmatprep.mubr.bf16.mxu0 0
        %1683 = vmatmul.mubr.bf16.gmra.mrb[0].mxu0 %v1514
        %v1684 = vpop.f32.mrb[0].mxu0
        %v1685 = vadd.f32 0.0, %v1684
        %v1686 = vpop.f32.mrb[0].mxu0
        %v1687 = vpop.f32.mrb[0].mxu0
        %v1688 = vpop.f32.mrb[0].mxu0
        %1689 = vmatprep.mubr.bf16.mxu0 0
        %1690 = vmatmul.mubr.bf16.gmra.mrb[0].mxu0 %v1517
        %v1691 = vpop.f32.mrb[0].mxu0
        %v1692 = vadd.f32 0.0, %v1691
        %v1693 = vpop.f32.mrb[0].mxu0
        %v1694 = vpop.f32.mrb[0].mxu0
        %v1695 = vpop.f32.mrb[0].mxu0
        %1696 = vmatprep.mubr.bf16.mxu0 0
        %1697 = vmatmul.mubr.bf16.gmra.mrb[0].mxu0 %v1520
        %v1698 = vpop.f32.mrb[0].mxu0
        %v1699 = vadd.f32 0.0, %v1698
        %v1700 = vpop.f32.mrb[0].mxu0
        %v1701 = vpop.f32.mrb[0].mxu0
        %v1702 = vpop.f32.mrb[0].mxu0
        %1703 = vmatprep.mubr.bf16.mxu0 0
        %1704 = vmatmul.mubr.bf16.gmra.mrb[0].mxu0 %v1523
        %v1705 = vpop.f32.mrb[0].mxu0
        %v1706 = vadd.f32 0.0, %v1705
        %v1707 = vpop.f32.mrb[0].mxu0
        %v1708 = vpop.f32.mrb[0].mxu0
        %v1709 = vpop.f32.mrb[0].mxu0
        %1710 = vmatprep.mubr.bf16.mxu0 0
        %1711 = vmatmul.mubr.bf16.gmra.mrb[0].mxu0 %v1526
        %v1712 = vpop.f32.mrb[0].mxu0
        %v1713 = vadd.f32 0.0, %v1712
        %v1714 = vpop.f32.mrb[0].mxu0
        %v1715 = vpop.f32.mrb[0].mxu0
        %v1716 = vpop.f32.mrb[0].mxu0
        %1717 = vmatprep.mubr.bf16.mxu0 0
        %1718 = vmatmul.mubr.bf16.gmra.mrb[0].mxu0 %v1529
        %v1719 = vpop.f32.mrb[0].mxu0
        %v1720 = vadd.f32 0.0, %v1719
        %v1721 = vpop.f32.mrb[0].mxu0
        %v1722 = vpop.f32.mrb[0].mxu0
        %v1723 = vpop.f32.mrb[0].mxu0
        %1724 = vmatprep.mubr.bf16.mxu0 0
        %1725 = vmatmul.mubr.bf16.gmra.mrb[0].mxu0 %v1532
        %v1726 = vpop.f32.mrb[0].mxu0
        %v1727 = vadd.f32 0.0, %v1726
        %v1728 = vpop.f32.mrb[0].mxu0
        %v1729 = vpop.f32.mrb[0].mxu0
        %v1730 = vpop.f32.mrb[0].mxu0
        %1731 = vmatprep.mubr.bf16.mxu0 0
        %1732 = vmatmul.mubr.bf16.gmra.mrb[0].mxu0 %v1645
        %v1733 = vpop.f32.mrb[0].mxu0
        %v1734 = vadd.f32 0.0, %v1733
        %v1735 = vpop.f32.mrb[0].mxu0
        %v1736 = vpop.f32.mrb[0].mxu0
        %v1737 = vpop.f32.mrb[0].mxu0
        %1738 = vdwg.mxu0
        %v1739 = vadd.f32 %v1626, %v1685
        %v1740 = vadd.f32 %v1627, %v1692
        %v1741 = vadd.f32 %v1628, %v1699
        %v1742 = vadd.f32 %v1629, %v1706
        %v1743 = vadd.f32 %v1630, %v1713
        %v1744 = vadd.f32 %v1631, %v1720
        %v1745 = vadd.f32 %v1632, %v1727
        %v1746 = vadd.f32 %v1633, %v1734
        %s1747 = scalar_lea.vmem %s6, 16
        %v1748 = vld [vmem:[%s1747] sm:$0x3]
        %v1749 = vshrl.u32 %v1437, 16
        %v1751 = vor.u32 %v1749, %v1642
        %v1753 = vshll.u32 %v1438, 16
        %v1755 = vrot.slane %v1753, 1
        %v1756 = vsel %vm1441, %v1751, %v1755
        %v1758 = vsel %vm636, %v1756, 0
        %v1761 = vsel %vm793, %v1748, 0
        %1763 = vmatprep.subr.bf16.mxu0 0
        %1764 = vmatpush1.bf16.msra.mxu0 %v1761
        %1765 = vmatprep.subr.bf16.mxu0 0
        %1766 = vmatpush1.bf16.msra.mxu0 0
        %1767 = vmatprep.subr.bf16.mxu0 0
        %1768 = vmatpush1.bf16.msra.mxu0 0
        %1769 = vmatprep.subr.bf16.mxu0 0
        %1770 = vmatpush1.bf16.msra.mxu0 0
        %1771 = vmatprep.subr.bf16.mxu0 0
        %1772 = vmatpush1.bf16.msra.mxu0 0
        %1773 = vmatprep.subr.bf16.mxu0 0
        %1774 = vmatpush1.bf16.msra.mxu0 0
        %1775 = vmatprep.subr.bf16.mxu0 0
        %1776 = vmatpush1.bf16.msra.mxu0 0
        %1777 = vmatprep.subr.bf16.mxu0 0
        %1778 = vmatpush1.bf16.msra.mxu0 0
        %1779 = vmatprep.subr.bf16.mxu0 0
        %1780 = vmatpush1.bf16.msra.mxu0 0
        %1781 = vmatprep.subr.bf16.mxu0 0
        %1782 = vmatpush1.bf16.msra.mxu0 0
        %1783 = vmatprep.subr.bf16.mxu0 0
        %1784 = vmatpush1.bf16.msra.mxu0 0
        %1785 = vmatprep.subr.bf16.mxu0 0
        %1786 = vmatpush1.bf16.msra.mxu0 0
        %1787 = vmatprep.subr.bf16.mxu0 0
        %1788 = vmatpush1.bf16.msra.mxu0 0
        %1789 = vmatprep.subr.bf16.mxu0 0
        %1790 = vmatpush1.bf16.msra.mxu0 0
        %1791 = vmatprep.subr.bf16.mxu0 0
        %1792 = vmatpush1.bf16.msra.mxu0 0
        %1793 = vmatprep.subr.bf16.mxu0 0
        %1794 = vmatpush1.bf16.msra.mxu0 0
        %1795 = vmatprep.mubr.bf16.mxu0 0
        %1796 = vmatmul.mubr.bf16.gmra.mrb[0].mxu0 %v1517
        %v1797 = vpop.f32.mrb[0].mxu0
        %v1798 = vadd.f32 0.0, %v1797
        %v1799 = vpop.f32.mrb[0].mxu0
        %v1800 = vpop.f32.mrb[0].mxu0
        %v1801 = vpop.f32.mrb[0].mxu0
        %1802 = vmatprep.mubr.bf16.mxu0 0
        %1803 = vmatmul.mubr.bf16.gmra.mrb[0].mxu0 %v1520
        %v1804 = vpop.f32.mrb[0].mxu0
        %v1805 = vadd.f32 0.0, %v1804
        %v1806 = vpop.f32.mrb[0].mxu0
        %v1807 = vpop.f32.mrb[0].mxu0
        %v1808 = vpop.f32.mrb[0].mxu0
        %1809 = vmatprep.mubr.bf16.mxu0 0
        %1810 = vmatmul.mubr.bf16.gmra.mrb[0].mxu0 %v1523
        %v1811 = vpop.f32.mrb[0].mxu0
        %v1812 = vadd.f32 0.0, %v1811
        %v1813 = vpop.f32.mrb[0].mxu0
        %v1814 = vpop.f32.mrb[0].mxu0
        %v1815 = vpop.f32.mrb[0].mxu0
        %1816 = vmatprep.mubr.bf16.mxu0 0
        %1817 = vmatmul.mubr.bf16.gmra.mrb[0].mxu0 %v1526
        %v1818 = vpop.f32.mrb[0].mxu0
        %v1819 = vadd.f32 0.0, %v1818
        %v1820 = vpop.f32.mrb[0].mxu0
        %v1821 = vpop.f32.mrb[0].mxu0
        %v1822 = vpop.f32.mrb[0].mxu0
        %1823 = vmatprep.mubr.bf16.mxu0 0
        %1824 = vmatmul.mubr.bf16.gmra.mrb[0].mxu0 %v1529
        %v1825 = vpop.f32.mrb[0].mxu0
        %v1826 = vadd.f32 0.0, %v1825
        %v1827 = vpop.f32.mrb[0].mxu0
        %v1828 = vpop.f32.mrb[0].mxu0
        %v1829 = vpop.f32.mrb[0].mxu0
        %1830 = vmatprep.mubr.bf16.mxu0 0
        %1831 = vmatmul.mubr.bf16.gmra.mrb[0].mxu0 %v1532
        %v1832 = vpop.f32.mrb[0].mxu0
        %v1833 = vadd.f32 0.0, %v1832
        %v1834 = vpop.f32.mrb[0].mxu0
        %v1835 = vpop.f32.mrb[0].mxu0
        %v1836 = vpop.f32.mrb[0].mxu0
        %1837 = vmatprep.mubr.bf16.mxu0 0
        %1838 = vmatmul.mubr.bf16.gmra.mrb[0].mxu0 %v1645
        %v1839 = vpop.f32.mrb[0].mxu0
        %v1840 = vadd.f32 0.0, %v1839
        %v1841 = vpop.f32.mrb[0].mxu0
        %v1842 = vpop.f32.mrb[0].mxu0
        %v1843 = vpop.f32.mrb[0].mxu0
        %1844 = vmatprep.mubr.bf16.mxu0 0
        %1845 = vmatmul.mubr.bf16.gmra.mrb[0].mxu0 %v1758
        %v1846 = vpop.f32.mrb[0].mxu0
        %v1847 = vadd.f32 0.0, %v1846
        %v1848 = vpop.f32.mrb[0].mxu0
        %v1849 = vpop.f32.mrb[0].mxu0
        %v1850 = vpop.f32.mrb[0].mxu0
        %1851 = vdwg.mxu0
        %v1852 = vadd.f32 %v1739, %v1798
        %v1853 = vadd.f32 %v1740, %v1805
        %v1854 = vadd.f32 %v1741, %v1812
        %v1855 = vadd.f32 %v1742, %v1819
        %v1856 = vadd.f32 %v1743, %v1826
        %v1857 = vadd.f32 %v1744, %v1833
        %v1858 = vadd.f32 %v1745, %v1840
        %v1859 = vadd.f32 %v1746, %v1847
        %v1860 = vld [vmem:[%s7] sm:$0x1]
        %v1862 = vlaneseq
        %v1863 = vshrl.u32 %v1862, 7
        %v1864 = vsub.s32 0, %v1863
        %v1865 = vrot.slane %v1860, %v1864
        %v1867 = vmul.f32 %v1852, %v1865
        %v1868 = vmul.f32 %v1853, %v1865
        %v1869 = vmul.f32 %v1854, %v1865
        %v1870 = vmul.f32 %v1855, %v1865
        %v1871 = vmul.f32 %v1856, %v1865
        %v1872 = vmul.f32 %v1857, %v1865
        %v1873 = vmul.f32 %v1858, %v1865
        %v1874 = vmul.f32 %v1859, %v1865
        %v1875 = vld [vmem:[%s8] sm:$0x1]
        %v1877 = vlaneseq
        %v1878 = vshrl.u32 %v1877, 7
        %v1879 = vsub.s32 0, %v1878
        %v1880 = vrot.slane %v1875, %v1879
        %v1882 = vadd.f32 %v1867, %v1880
        %v1883 = vadd.f32 %v1868, %v1880
        %v1884 = vadd.f32 %v1869, %v1880
        %v1885 = vadd.f32 %v1870, %v1880
        %v1886 = vadd.f32 %v1871, %v1880
        %v1887 = vadd.f32 %v1872, %v1880
        %v1888 = vadd.f32 %v1873, %v1880
        %v1889 = vadd.f32 %v1874, %v1880
        %v1890 = vmax.f32 %v1882, 0.0
        %v1891 = vmax.f32 %v1883, 0.0
        %v1892 = vmax.f32 %v1884, 0.0
        %v1893 = vmax.f32 %v1885, 0.0
        %v1894 = vmax.f32 %v1886, 0.0
        %v1895 = vmax.f32 %v1887, 0.0
        %v1896 = vmax.f32 %v1888, 0.0
        %v1897 = vmax.f32 %v1889, 0.0
        %v1898 = vpack.c.bf16 %v1891, %v1890
        %v1899 = vpack.c.bf16 %v1893, %v1892
        %v1900 = vpack.c.bf16 %v1895, %v1894
        %v1901 = vpack.c.bf16 %v1897, %v1896
        %v1902 = vld [vmem:[%s9] sm:$0x3]
        %v1903 = vpack.c.bf16 %v459, %v458
        %v1904 = vpack.c.bf16 %v461, %v460
        %v1905 = vpack.c.bf16 %v463, %v462
        %v1906 = vpack.c.bf16 %v465, %v464
        %v1907 = vld [vmem:[%s10] sm:$0xf]
        %v1908 = vld [vmem:[%s10 + $0x4] sm:$0xf]
        %v1909 = vld [vmem:[%s11] sm:$0x1]
        %v1911 = vlaneseq
        %v1912 = vshrl.u32 %v1911, 7
        %v1913 = vsub.s32 0, %v1912
        %v1914 = vrot.slane %v1909, %v1913
        %v1918 = vunpack.c.l.b16 %v1907
        %v1919 = vunpack.c.l.b16 %v1908
        %v1920 = vpack.c.b16 %v1919, %v1918
        %v1923 = vsel %vm516, %v1903, 0
        %v1926 = vsel %vm516, %v1904, 0
        %v1929 = vsel %vm516, %v1905, 0
        %v1932 = vsel %vm516, %v1906, 0
        %1934 = vmatprep.subr.bf16.mxu0 0
        %1935 = vmatpush1.bf16.msra.mxu0 %v1920
        %1936 = vmatprep.subr.bf16.mxu0 0
        %1937 = vmatpush1.bf16.msra.mxu0 0
        %1938 = vmatprep.subr.bf16.mxu0 0
        %1939 = vmatpush1.bf16.msra.mxu0 0
        %1940 = vmatprep.subr.bf16.mxu0 0
        %1941 = vmatpush1.bf16.msra.mxu0 0
        %1942 = vmatprep.subr.bf16.mxu0 0
        %1943 = vmatpush1.bf16.msra.mxu0 0
        %1944 = vmatprep.subr.bf16.mxu0 0
        %1945 = vmatpush1.bf16.msra.mxu0 0
        %1946 = vmatprep.subr.bf16.mxu0 0
        %1947 = vmatpush1.bf16.msra.mxu0 0
        %1948 = vmatprep.subr.bf16.mxu0 0
        %1949 = vmatpush1.bf16.msra.mxu0 0
        %1950 = vmatprep.subr.bf16.mxu0 0
        %1951 = vmatpush1.bf16.msra.mxu0 0
        %1952 = vmatprep.subr.bf16.mxu0 0
        %1953 = vmatpush1.bf16.msra.mxu0 0
        %1954 = vmatprep.subr.bf16.mxu0 0
        %1955 = vmatpush1.bf16.msra.mxu0 0
        %1956 = vmatprep.subr.bf16.mxu0 0
        %1957 = vmatpush1.bf16.msra.mxu0 0
        %1958 = vmatprep.subr.bf16.mxu0 0
        %1959 = vmatpush1.bf16.msra.mxu0 0
        %1960 = vmatprep.subr.bf16.mxu0 0
        %1961 = vmatpush1.bf16.msra.mxu0 0
        %1962 = vmatprep.subr.bf16.mxu0 0
        %1963 = vmatpush1.bf16.msra.mxu0 0
        %1964 = vmatprep.subr.bf16.mxu0 0
        %1965 = vmatpush1.bf16.msra.mxu0 0
        %1966 = vmatprep.mubr.bf16.mxu0 0
        %1967 = vmatmul.mubr.bf16.gmra.mrb[0].mxu0 %v1923
        %v1968 = vpop.f32.mrb[0].mxu0
        %v1969 = vadd.f32 %v1914, %v1968
        %v1970 = vpop.f32.mrb[0].mxu0
        %v1971 = vpop.f32.mrb[0].mxu0
        %v1972 = vadd.f32 %v1914, %v1971
        %v1973 = vpop.f32.mrb[0].mxu0
        %1974 = vmatprep.mubr.bf16.mxu0 0
        %1975 = vmatmul.mubr.bf16.gmra.mrb[0].mxu0 %v1926
        %v1976 = vpop.f32.mrb[0].mxu0
        %v1977 = vadd.f32 %v1914, %v1976
        %v1978 = vpop.f32.mrb[0].mxu0
        %v1979 = vpop.f32.mrb[0].mxu0
        %v1980 = vadd.f32 %v1914, %v1979
        %v1981 = vpop.f32.mrb[0].mxu0
        %1982 = vmatprep.mubr.bf16.mxu0 0
        %1983 = vmatmul.mubr.bf16.gmra.mrb[0].mxu0 %v1929
        %v1984 = vpop.f32.mrb[0].mxu0
        %v1985 = vadd.f32 %v1914, %v1984
        %v1986 = vpop.f32.mrb[0].mxu0
        %v1987 = vpop.f32.mrb[0].mxu0
        %v1988 = vadd.f32 %v1914, %v1987
        %v1989 = vpop.f32.mrb[0].mxu0
        %1990 = vmatprep.mubr.bf16.mxu0 0
        %1991 = vmatmul.mubr.bf16.gmra.mrb[0].mxu0 %v1932
        %v1992 = vpop.f32.mrb[0].mxu0
        %v1993 = vadd.f32 %v1914, %v1992
        %v1994 = vpop.f32.mrb[0].mxu0
        %v1995 = vpop.f32.mrb[0].mxu0
        %v1996 = vadd.f32 %v1914, %v1995
        %v1997 = vpop.f32.mrb[0].mxu0
        %1998 = vdwg.mxu0
        %v2000 = vsel %vm636, %v1898, 0
        %v2003 = vsel %vm636, %v1899, 0
        %v2006 = vsel %vm636, %v1900, 0
        %v2009 = vsel %vm636, %v1901, 0
        %v2012 = vsel %vm793, %v1902, 0
        %2014 = vmatprep.subr.bf16.mxu0 0
        %2015 = vmatpush1.bf16.msra.mxu0 %v2012
        %2016 = vmatprep.subr.bf16.mxu0 0
        %2017 = vmatpush1.bf16.msra.mxu0 0
        %2018 = vmatprep.subr.bf16.mxu0 0
        %2019 = vmatpush1.bf16.msra.mxu0 0
        %2020 = vmatprep.subr.bf16.mxu0 0
        %2021 = vmatpush1.bf16.msra.mxu0 0
        %2022 = vmatprep.subr.bf16.mxu0 0
        %2023 = vmatpush1.bf16.msra.mxu0 0
        %2024 = vmatprep.subr.bf16.mxu0 0
        %2025 = vmatpush1.bf16.msra.mxu0 0
        %2026 = vmatprep.subr.bf16.mxu0 0
        %2027 = vmatpush1.bf16.msra.mxu0 0
        %2028 = vmatprep.subr.bf16.mxu0 0
        %2029 = vmatpush1.bf16.msra.mxu0 0
        %2030 = vmatprep.subr.bf16.mxu0 0
        %2031 = vmatpush1.bf16.msra.mxu0 0
        %2032 = vmatprep.subr.bf16.mxu0 0
        %2033 = vmatpush1.bf16.msra.mxu0 0
        %2034 = vmatprep.subr.bf16.mxu0 0
        %2035 = vmatpush1.bf16.msra.mxu0 0
        %2036 = vmatprep.subr.bf16.mxu0 0
        %2037 = vmatpush1.bf16.msra.mxu0 0
        %2038 = vmatprep.subr.bf16.mxu0 0
        %2039 = vmatpush1.bf16.msra.mxu0 0
        %2040 = vmatprep.subr.bf16.mxu0 0
        %2041 = vmatpush1.bf16.msra.mxu0 0
        %2042 = vmatprep.subr.bf16.mxu0 0
        %2043 = vmatpush1.bf16.msra.mxu0 0
        %2044 = vmatprep.subr.bf16.mxu0 0
        %2045 = vmatpush1.bf16.msra.mxu0 0
        %2046 = vmatprep.mubr.bf16.mxu0 0
        %2047 = vmatmul.mubr.bf16.gmra.mrb[0].mxu0 %v2000
        %v2048 = vpop.f32.mrb[0].mxu0
        %v2049 = vadd.f32 %v1969, %v2048
        %v2050 = vpop.f32.mrb[0].mxu0
        %v2051 = vpop.f32.mrb[0].mxu0
        %v2052 = vadd.f32 %v1972, %v2051
        %v2053 = vpop.f32.mrb[0].mxu0
        %2054 = vmatprep.mubr.bf16.mxu0 0
        %2055 = vmatmul.mubr.bf16.gmra.mrb[0].mxu0 %v2003
        %v2056 = vpop.f32.mrb[0].mxu0
        %v2057 = vadd.f32 %v1977, %v2056
        %v2058 = vpop.f32.mrb[0].mxu0
        %v2059 = vpop.f32.mrb[0].mxu0
        %v2060 = vadd.f32 %v1980, %v2059
        %v2061 = vpop.f32.mrb[0].mxu0
        %2062 = vmatprep.mubr.bf16.mxu0 0
        %2063 = vmatmul.mubr.bf16.gmra.mrb[0].mxu0 %v2006
        %v2064 = vpop.f32.mrb[0].mxu0
        %v2065 = vadd.f32 %v1985, %v2064
        %v2066 = vpop.f32.mrb[0].mxu0
        %v2067 = vpop.f32.mrb[0].mxu0
        %v2068 = vadd.f32 %v1988, %v2067
        %v2069 = vpop.f32.mrb[0].mxu0
        %2070 = vmatprep.mubr.bf16.mxu0 0
        %2071 = vmatmul.mubr.bf16.gmra.mrb[0].mxu0 %v2009
        %v2072 = vpop.f32.mrb[0].mxu0
        %v2073 = vadd.f32 %v1993, %v2072
        %v2074 = vpop.f32.mrb[0].mxu0
        %v2075 = vpop.f32.mrb[0].mxu0
        %v2076 = vadd.f32 %v1996, %v2075
        %v2077 = vpop.f32.mrb[0].mxu0
        %2078 = vdwg.mxu0
        %2079 = vst.msk [vmem:[%s456] sm:$0xff] %vm516, %v2049
        %2080 = vst.msk [vmem:[%s456 + $0x8] sm:$0xff] %vm516, %v2052
        %2081 = vst.msk [vmem:[%s456 + $0x10] sm:$0xff] %vm516, %v2057
        %2082 = vst.msk [vmem:[%s456 + $0x18] sm:$0xff] %vm516, %v2060
        %2083 = vst.msk [vmem:[%s456 + $0x20] sm:$0xff] %vm516, %v2065
        %2084 = vst.msk [vmem:[%s456 + $0x28] sm:$0xff] %vm516, %v2068
        %2085 = vst.msk [vmem:[%s456 + $0x30] sm:$0xff] %vm516, %v2073
        %2086 = vst.msk [vmem:[%s456 + $0x38] sm:$0xff] %vm516, %v2076
        %s2087 = sand.u32 %s295, 1
        %s2088 = scalar_lea.sflag [#allocation5], %s2087
        %s2089 = sand.u32 %s295, 1
        %s2090 = smul.addr %s2089, 64
        %s2091 = scalar_lea.vmem [#allocation9], %s2090
        // Predicated region
        $region81: #{tpu_custom_call.1} parent=67 // pred_check
          %p2092 = pneg %p305
        $region82: #{tpu_custom_call.1} parent=67 // pred_check_branch
          %2094 = sbr.rel (%p2092) target = $region84
        $region83: #{tpu_custom_call.1} parent=67 // pred_region
          %s2096 = ssub.s32 1024, 1024
          %2097 = vsyncadd %s2088, %s2096
          %s2098 = smul.addr %s30, 8
          %s2099 = smul.addr %s2098, 128
          %s2100 = scalar_lea.hbm %s12, %s2099
          %s2101 = sshll.u32 %s2091, 4
          %s2102 = int_to_ptr.vmem [resolvable:$true] %s2101
          %2107 = dma.vmem_to_hbm [thread:$0]  %s2102, 1024, %s2100, %s2088, 128, 128, 8
        $region84: #{tpu_custom_call.1} parent=67 // pred_fallthru
          _
      $region68: #{tpu_custom_call.1} parent=5 // pred_fallthru
        _
      %p2108 = scmp.le.s32.totalorder 2, %s25
      // Predicated region
      $region85: #{tpu_custom_call.1} parent=5 // pred_check
        %p2109 = pneg %p2108
      $region86: #{tpu_custom_call.1} parent=5 // pred_check_branch
        %2111 = sbr.rel (%p2109) target = $region88
      $region87: #{tpu_custom_call.1} parent=5 // pred_region
        %s2112 = ssub.s32 %s25, 2
        // Predicated region
        $region89: #{tpu_custom_call.1} parent=87 // pred_check
          %p2113 = pneg %p311
        $region90: #{tpu_custom_call.1} parent=87 // pred_check_branch
          %2115 = sbr.rel (%p2113) target = $region92
        $region91: #{tpu_custom_call.1} parent=87 // pred_region
          %s2116 = sand.u32 %s296, 1
          %s2117 = scalar_lea.sflag [#allocation5], %s2116
          %s2118 = sand.u32 %s296, 1
          %s2119 = smul.addr %s2118, 64
          %s2120 = scalar_lea.vmem [#allocation9], %s2119
          %2121 = dma.done %s2117, 1024
        $region92: #{tpu_custom_call.1} parent=87 // pred_fallthru
          _
      $region88: #{tpu_custom_call.1} parent=5 // pred_fallthru
        _
    $region6: #{tpu_custom_call.1} parent=1 // loop_footer
      %s29 = sadd.s32 1, %s25
    $region7: #{tpu_custom_call.1} parent=1 // loop_footer_branch
      %24 = sbr.rel target = $region3
    $region8: #{tpu_custom_call.1} parent=1 // loop_exit
      _
    %2122 = vsyncpa [#allocation4], 1
    %s2123 = scalar_lea.sflag [#allocation4], 1
    %2124 = vsyncpa %s2123, 1
    %2125 = vsyncpa [#allocation7], 1
    %2126 = vsyncpa [#allocation5], 1
    %s2127 = scalar_lea.sflag [#allocation5], 1
    %2128 = vsyncpa %s2127, 1

</llo_original>
